<compile_context>
chip_gen: v7x
topology: tpu7x:2x2x1
jax: 0.10.0
libtpu: 0.0.40
codegen_flags: <defaults>
</compile_context>

<pallas_src>
import functools

import jax
import jax.numpy as jnp
from jax import lax
from jax.experimental import pallas as pl
from jax.experimental.pallas import tpu as pltpu


# ------------------------------ Pallas kernel ------------------------------ #

def _coda_dau_kernel(u_ref, w_ref, o_ref, *, eps):
    """Fused DAU contraction + normalisation for one (batch, HW-tile, Cout-tile).

    u_ref: (D, tHW)        unfolded input patches
    w_ref: (D, tC, tHW)    dynamically predicted weights (native layout)
    o_ref: (tC, tHW)       normalised activations
    """
    D = w_ref.shape[0]
    zeros = jnp.zeros(o_ref.shape, jnp.float32)

    def body(d, carry):
        acc, ssq = carry
        wd = w_ref[d].astype(jnp.float32)               # [tC, tHW]
        ud = u_ref[pl.ds(d, 1), :].astype(jnp.float32)  # [1,  tHW] -> broadcasts over tC
        acc = acc + wd * ud                             # weighted sum over patch dim
        ssq = ssq + wd * wd                             # fused ||w||^2 over patch dim
        return acc, ssq

    # Full unroll for small patch dims keeps the loop visible to the scheduler;
    # moderate unroll otherwise to bound trace size / vreg pressure.
    unroll = True if D <= 64 else 8
    acc, ssq = lax.fori_loop(0, D, body, (zeros, zeros), unroll=unroll)

    # eps placement matches the reference: out = acc / (sqrt(ssq) + eps).
    inv_n = pl.reciprocal(jnp.sqrt(ssq) + eps, approx=False)
    o_ref[...] = (acc * inv_n).astype(o_ref.dtype)


# ------------------------------ tiling helper ------------------------------ #

def _pick_tiles(D, Cout, HW, itemsize, budget_bytes=24 * 1024 * 1024):
    """Choose (tC, tHW): lane-dense, (8,128)-legal, double-buffered within budget."""
    # Lane tile: largest candidate dividing HW; otherwise the full HW (a
    # full-extent dim is always a legal block even when not a multiple of 128).
    tHW = HW
    for cand in (1024, 512, 256, 128):
        if HW % cand == 0:
            tHW = cand
            break
    # TODO(synk): for ragged spatial sizes (HW not a multiple of 128), pad HW up
    # to a multiple of 128 instead of falling back to a single full-HW block.

    def footprint(tc, thw):
        # double-buffered weightings + unfolded + output tiles, in bytes
        return 2 * (D * tc * thw + D * thw + tc * thw) * itemsize

    # Cout tile: a multiple of 8 dividing Cout (else the full Cout), grown while
    # the double-buffered footprint stays inside the VMEM budget.
    if Cout % 8 == 0:
        tC = 8
        while (tC * 2 <= Cout and Cout % (tC * 2) == 0
               and footprint(tC * 2, tHW) <= budget_bytes):
            tC *= 2
    else:
        tC = Cout

    # Shrink the lane tile if the weightings stream still blows the budget.
    while footprint(tC, tHW) > budget_bytes and tHW % 256 == 0:
        tHW //= 2

    return tC, tHW, footprint(tC, tHW)


# ----------------------------- Pallas hot path ------------------------------ #

def coda_dau_forward(unfolded, weightings, *, eps=1e-6):
    """activations = (unfolded * weightings).sum(patch) / (||weightings||_2 + eps).

    unfolded:   [B, D, 1, H, W]
    weightings: [B, D, Cout, H, W]   (native prediction layout — not transposed)
    returns:    [B, Cout, H, W]
    """
    B, D, Cout, H, W = weightings.shape
    HW = H * W
    u = unfolded.reshape(B, D, HW)           # free reshape, no copy
    w = weightings.reshape(B, D, Cout, HW)   # native layout, NO transpose

    tC, tHW, fp = _pick_tiles(D, Cout, HW, jnp.dtype(w.dtype).itemsize)
    assert HW % tHW == 0 and Cout % tC == 0
    # Cout innermost: the (Cout-independent) unfolded block index repeats across
    # consecutive steps, so its DMA is skipped by the pipeline.
    grid = (B, HW // tHW, Cout // tC)

    vmem_limit = int(min(max(fp + (4 << 20), 16 << 20), 48 << 20))

    out = pl.pallas_call(
        functools.partial(_coda_dau_kernel, eps=eps),
        out_shape=jax.ShapeDtypeStruct((B, Cout, HW), weightings.dtype),
        grid_spec=pltpu.PrefetchScalarGridSpec(
            num_scalar_prefetch=0,
            grid=grid,
            in_specs=[
                pl.BlockSpec((None, D, tHW), lambda b, h, c: (b, 0, h)),
                pl.BlockSpec((None, D, tC, tHW), lambda b, h, c: (b, 0, c, h)),
            ],
            out_specs=pl.BlockSpec((None, tC, tHW), lambda b, h, c: (b, c, h)),
        ),
        compiler_params=pltpu.CompilerParams(
            dimension_semantics=("parallel", "parallel", "parallel"),
            vmem_limit_bytes=vmem_limit),
    )(u, w)
    return out.reshape(B, Cout, H, W)


# -------------------------- Weighting module (glue) ------------------------- #

class SimpleDAUWeighting:
    """Weighting module required by CoDAConv2d: predicts a dynamic weight vector
    per output unit and spatial location via a conv, and provides unfold/fold
    (F.unfold semantics).  The norm over the patch dim is fused into the Pallas
    kernel; __call__'s norm output exists only for the pure-JAX reference."""

    def __init__(self, in_channels, out_channels, kernel_size, key):
        self.in_channels = in_channels
        self.out_channels = out_channels
        self.k = kernel_size
        self.pad = kernel_size // 2
        self.D = in_channels * kernel_size * kernel_size
        # Deterministic conv weight predicting D * C_out values per location.
        self.conv_w = 0.1 * jax.random.normal(
            key,
            (self.D * out_channels, in_channels, kernel_size, kernel_size),
            dtype=jnp.float32)

    def predict_weightings(self, x):
        """Dynamic weight prediction only — the norm pass is fused in-kernel."""
        B, C, H, W = x.shape
        pred = lax.conv_general_dilated(
            x, self.conv_w, window_strides=(1, 1),
            padding=[(self.pad, self.pad)] * 2,
            dimension_numbers=('NCHW', 'OIHW', 'NCHW'))
        return pred.reshape(B, self.D, self.out_channels, H, W)

    def __call__(self, x):
        weightings = self.predict_weightings(x)
        norm = jnp.sqrt(jnp.sum(weightings ** 2, axis=1, keepdims=True)) + 1e-6
        return weightings, norm          # [B,D,Cout,H,W], [B,1,Cout,H,W]

    def unfold(self, x, w_shape):
        # F.unfold semantics: output index d = c*k*k + kh*k + kw
        B, C, H, W = x.shape
        k, p = self.k, self.pad
        xp = jnp.pad(x, ((0, 0), (0, 0), (p, p), (p, p)))
        patches = [xp[:, :, kh:kh + H, kw:kw + W]
                   for kh in range(k) for kw in range(k)]
        u = jnp.stack(patches, axis=2).reshape(B, C * k * k, H, W)
        # TODO(synk): unfold could be built in-kernel from an over-fetched input
        # tile (pl.ds shifts) to avoid the k^2-duplicated HBM tensor; it is a
        # minor stream next to weightings (Cout x larger), so it stays in JAX.
        return u.reshape(B, self.D, 1, H, W)

    def fold(self, t):
        # TODO(synk): fold() is only needed by CoDAConv2d.reverse() (matrix
        # regularisation), which is not part of the forward pass.
        raise NotImplementedError


# ------------------------------- CoDAConv2d --------------------------------- #

class CoDAConv2d:
    def __init__(self, weighting_module):
        self.weight_mod = weighting_module
        assert hasattr(self.weight_mod, 'fold')
        assert hasattr(self.weight_mod, 'unfold')

    def forward(self, in_tensor):
        # Predict the dynamic weights; the weight-norm over the patch dim is
        # computed inside the Pallas kernel (saves a full HBM pass).
        if hasattr(self.weight_mod, 'predict_weightings'):
            weightings = self.weight_mod.predict_weightings(in_tensor)
        else:
            weightings, _ = self.weight_mod(in_tensor)
        unfolded_input = self.weight_mod.unfold(in_tensor, weightings.shape)
        return coda_dau_forward(unfolded_input, weightings)


def reference_forward(x, mod):
    """Pure-JAX reference mirroring the PyTorch forward exactly."""
    weightings, norm = mod(x)
    unfolded = mod.unfold(x, weightings.shape)
    acts = (unfolded * weightings).sum(1)
    return acts / jnp.squeeze(norm, 1)


# ---------------------------------- main ------------------------------------ #

if __name__ == "__main__":
    key = jax.random.PRNGKey(0)
    kx, kw = jax.random.split(key)

    B, C_in, H, W = 2, 4, 16, 16
    C_out, ksize = 8, 3

    x = jax.random.normal(kx, (B, C_in, H, W), dtype=jnp.float32)

    weight_mod = SimpleDAUWeighting(C_in, C_out, ksize, kw)
    layer = CoDAConv2d(weight_mod)

    out = jax.block_until_ready(layer.forward(x))
    ref = jax.block_until_ready(reference_forward(x, weight_mod))

    assert out.shape == (B, C_out, H, W), out.shape
    assert jnp.allclose(out, ref, rtol=1e-5, atol=1e-5), \
        float(jnp.max(jnp.abs(out - ref)))

    print("KERNEL_OK")
</pallas_src>

<mosaic_0001>
module attributes {stable_mosaic.version = 11 : i64} {
  func.func @_coda_dau_kernel(%arg0: i32, %arg1: i32, %arg2: i32, %arg3: memref<1x36x256xf32, #tpu.memory_space<vmem>>, %arg4: memref<1x36x8x256xf32, #tpu.memory_space<vmem>>, %arg5: memref<1x8x256xf32, #tpu.memory_space<vmem>>) attributes {dimension_semantics = [#tpu.dimension_semantics<parallel>, #tpu.dimension_semantics<parallel>, #tpu.dimension_semantics<parallel>], iteration_bounds = array<i64: 2, 1, 1>, scalar_prefetch = 0 : i64, scratch_operands = 0 : i64, tpu.core_type = #tpu.core_type<tc>, window_params = [{transform_indices = @transform_0, window_bounds = array<i64: 1, 36, 256>}, {transform_indices = @transform_1, window_bounds = array<i64: 1, 36, 8, 256>}, {transform_indices = @transform_2, window_bounds = array<i64: 1, 8, 256>}]} {
    %cst = arith.constant 0.000000e+00 : f32
    %0 = vector.broadcast %cst : f32 to vector<8x256xf32>
    %c0_i32 = arith.constant 0 : i32
    %c0 = arith.constant 0 : index
    %1 = arith.index_cast %c0_i32 : i32 to index
    %c0_0 = arith.constant 0 : index
    %c0_1 = arith.constant 0 : index
    %2 = vector.load %arg4[%c0, %1, %c0_0, %c0_1] : memref<1x36x8x256xf32, #tpu.memory_space<vmem>>, vector<1x1x8x256xf32>
    %3 = vector.shape_cast %2 : vector<1x1x8x256xf32> to vector<8x256xf32>
    %c0_2 = arith.constant 0 : index
    %4 = arith.index_cast %c0_i32 : i32 to index
    %c0_3 = arith.constant 0 : index
    %5 = vector.load %arg3[%c0_2, %4, %c0_3] : memref<1x36x256xf32, #tpu.memory_space<vmem>>, vector<1x1x256xf32>
    %6 = vector.shape_cast %5 : vector<1x1x256xf32> to vector<1x256xf32>
    %7 = vector.broadcast %6 : vector<1x256xf32> to vector<8x256xf32>
    %8 = arith.mulf %3, %7 : vector<8x256xf32>
    %9 = arith.addf %0, %8 : vector<8x256xf32>
    %10 = arith.mulf %3, %3 : vector<8x256xf32>
    %11 = arith.addf %0, %10 : vector<8x256xf32>
    %c1_i32 = arith.constant 1 : i32
    %c0_4 = arith.constant 0 : index
    %12 = arith.index_cast %c1_i32 : i32 to index
    %c0_5 = arith.constant 0 : index
    %c0_6 = arith.constant 0 : index
    %13 = vector.load %arg4[%c0_4, %12, %c0_5, %c0_6] : memref<1x36x8x256xf32, #tpu.memory_space<vmem>>, vector<1x1x8x256xf32>
    %14 = vector.shape_cast %13 : vector<1x1x8x256xf32> to vector<8x256xf32>
    %c0_7 = arith.constant 0 : index
    %15 = arith.index_cast %c1_i32 : i32 to index
    %c0_8 = arith.constant 0 : index
    %16 = vector.load %arg3[%c0_7, %15, %c0_8] : memref<1x36x256xf32, #tpu.memory_space<vmem>>, vector<1x1x256xf32>
    %17 = vector.shape_cast %16 : vector<1x1x256xf32> to vector<1x256xf32>
    %18 = vector.broadcast %17 : vector<1x256xf32> to vector<8x256xf32>
    %19 = arith.mulf %14, %18 : vector<8x256xf32>
    %20 = arith.addf %9, %19 : vector<8x256xf32>
    %21 = arith.mulf %14, %14 : vector<8x256xf32>
    %22 = arith.addf %11, %21 : vector<8x256xf32>
    %c2_i32 = arith.constant 2 : i32
    %c0_9 = arith.constant 0 : index
    %23 = arith.index_cast %c2_i32 : i32 to index
    %c0_10 = arith.constant 0 : index
    %c0_11 = arith.constant 0 : index
    %24 = vector.load %arg4[%c0_9, %23, %c0_10, %c0_11] : memref<1x36x8x256xf32, #tpu.memory_space<vmem>>, vector<1x1x8x256xf32>
    %25 = vector.shape_cast %24 : vector<1x1x8x256xf32> to vector<8x256xf32>
    %c0_12 = arith.constant 0 : index
    %26 = arith.index_cast %c2_i32 : i32 to index
    %c0_13 = arith.constant 0 : index
    %27 = vector.load %arg3[%c0_12, %26, %c0_13] : memref<1x36x256xf32, #tpu.memory_space<vmem>>, vector<1x1x256xf32>
    %28 = vector.shape_cast %27 : vector<1x1x256xf32> to vector<1x256xf32>
    %29 = vector.broadcast %28 : vector<1x256xf32> to vector<8x256xf32>
    %30 = arith.mulf %25, %29 : vector<8x256xf32>
    %31 = arith.addf %20, %30 : vector<8x256xf32>
    %32 = arith.mulf %25, %25 : vector<8x256xf32>
    %33 = arith.addf %22, %32 : vector<8x256xf32>
    %c3_i32 = arith.constant 3 : i32
    %c0_14 = arith.constant 0 : index
    %34 = arith.index_cast %c3_i32 : i32 to index
    %c0_15 = arith.constant 0 : index
    %c0_16 = arith.constant 0 : index
    %35 = vector.load %arg4[%c0_14, %34, %c0_15, %c0_16] : memref<1x36x8x256xf32, #tpu.memory_space<vmem>>, vector<1x1x8x256xf32>
    %36 = vector.shape_cast %35 : vector<1x1x8x256xf32> to vector<8x256xf32>
    %c0_17 = arith.constant 0 : index
    %37 = arith.index_cast %c3_i32 : i32 to index
    %c0_18 = arith.constant 0 : index
    %38 = vector.load %arg3[%c0_17, %37, %c0_18] : memref<1x36x256xf32, #tpu.memory_space<vmem>>, vector<1x1x256xf32>
    %39 = vector.shape_cast %38 : vector<1x1x256xf32> to vector<1x256xf32>
    %40 = vector.broadcast %39 : vector<1x256xf32> to vector<8x256xf32>
    %41 = arith.mulf %36, %40 : vector<8x256xf32>
    %42 = arith.addf %31, %41 : vector<8x256xf32>
    %43 = arith.mulf %36, %36 : vector<8x256xf32>
    %44 = arith.addf %33, %43 : vector<8x256xf32>
    %c4_i32 = arith.constant 4 : i32
    %c0_19 = arith.constant 0 : index
    %45 = arith.index_cast %c4_i32 : i32 to index
    %c0_20 = arith.constant 0 : index
    %c0_21 = arith.constant 0 : index
    %46 = vector.load %arg4[%c0_19, %45, %c0_20, %c0_21] : memref<1x36x8x256xf32, #tpu.memory_space<vmem>>, vector<1x1x8x256xf32>
    %47 = vector.shape_cast %46 : vector<1x1x8x256xf32> to vector<8x256xf32>
    %c0_22 = arith.constant 0 : index
    %48 = arith.index_cast %c4_i32 : i32 to index
    %c0_23 = arith.constant 0 : index
    %49 = vector.load %arg3[%c0_22, %48, %c0_23] : memref<1x36x256xf32, #tpu.memory_space<vmem>>, vector<1x1x256xf32>
    %50 = vector.shape_cast %49 : vector<1x1x256xf32> to vector<1x256xf32>
    %51 = vector.broadcast %50 : vector<1x256xf32> to vector<8x256xf32>
    %52 = arith.mulf %47, %51 : vector<8x256xf32>
    %53 = arith.addf %42, %52 : vector<8x256xf32>
    %54 = arith.mulf %47, %47 : vector<8x256xf32>
    %55 = arith.addf %44, %54 : vector<8x256xf32>
    %c5_i32 = arith.constant 5 : i32
    %c0_24 = arith.constant 0 : index
    %56 = arith.index_cast %c5_i32 : i32 to index
    %c0_25 = arith.constant 0 : index
    %c0_26 = arith.constant 0 : index
    %57 = vector.load %arg4[%c0_24, %56, %c0_25, %c0_26] : memref<1x36x8x256xf32, #tpu.memory_space<vmem>>, vector<1x1x8x256xf32>
    %58 = vector.shape_cast %57 : vector<1x1x8x256xf32> to vector<8x256xf32>
    %c0_27 = arith.constant 0 : index
    %59 = arith.index_cast %c5_i32 : i32 to index
    %c0_28 = arith.constant 0 : index
    %60 = vector.load %arg3[%c0_27, %59, %c0_28] : memref<1x36x256xf32, #tpu.memory_space<vmem>>, vector<1x1x256xf32>
    %61 = vector.shape_cast %60 : vector<1x1x256xf32> to vector<1x256xf32>
    %62 = vector.broadcast %61 : vector<1x256xf32> to vector<8x256xf32>
    %63 = arith.mulf %58, %62 : vector<8x256xf32>
    %64 = arith.addf %53, %63 : vector<8x256xf32>
    %65 = arith.mulf %58, %58 : vector<8x256xf32>
    %66 = arith.addf %55, %65 : vector<8x256xf32>
    %c6_i32 = arith.constant 6 : i32
    %c0_29 = arith.constant 0 : index
    %67 = arith.index_cast %c6_i32 : i32 to index
    %c0_30 = arith.constant 0 : index
    %c0_31 = arith.constant 0 : index
    %68 = vector.load %arg4[%c0_29, %67, %c0_30, %c0_31] : memref<1x36x8x256xf32, #tpu.memory_space<vmem>>, vector<1x1x8x256xf32>
    %69 = vector.shape_cast %68 : vector<1x1x8x256xf32> to vector<8x256xf32>
    %c0_32 = arith.constant 0 : index
    %70 = arith.index_cast %c6_i32 : i32 to index
    %c0_33 = arith.constant 0 : index
    %71 = vector.load %arg3[%c0_32, %70, %c0_33] : memref<1x36x256xf32, #tpu.memory_space<vmem>>, vector<1x1x256xf32>
    %72 = vector.shape_cast %71 : vector<1x1x256xf32> to vector<1x256xf32>
    %73 = vector.broadcast %72 : vector<1x256xf32> to vector<8x256xf32>
    %74 = arith.mulf %69, %73 : vector<8x256xf32>
    %75 = arith.addf %64, %74 : vector<8x256xf32>
    %76 = arith.mulf %69, %69 : vector<8x256xf32>
    %77 = arith.addf %66, %76 : vector<8x256xf32>
    %c7_i32 = arith.constant 7 : i32
    %c0_34 = arith.constant 0 : index
    %78 = arith.index_cast %c7_i32 : i32 to index
    %c0_35 = arith.constant 0 : index
    %c0_36 = arith.constant 0 : index
    %79 = vector.load %arg4[%c0_34, %78, %c0_35, %c0_36] : memref<1x36x8x256xf32, #tpu.memory_space<vmem>>, vector<1x1x8x256xf32>
    %80 = vector.shape_cast %79 : vector<1x1x8x256xf32> to vector<8x256xf32>
    %c0_37 = arith.constant 0 : index
    %81 = arith.index_cast %c7_i32 : i32 to index
    %c0_38 = arith.constant 0 : index
    %82 = vector.load %arg3[%c0_37, %81, %c0_38] : memref<1x36x256xf32, #tpu.memory_space<vmem>>, vector<1x1x256xf32>
    %83 = vector.shape_cast %82 : vector<1x1x256xf32> to vector<1x256xf32>
    %84 = vector.broadcast %83 : vector<1x256xf32> to vector<8x256xf32>
    %85 = arith.mulf %80, %84 : vector<8x256xf32>
    %86 = arith.addf %75, %85 : vector<8x256xf32>
    %87 = arith.mulf %80, %80 : vector<8x256xf32>
    %88 = arith.addf %77, %87 : vector<8x256xf32>
    %c8_i32 = arith.constant 8 : i32
    %c0_39 = arith.constant 0 : index
    %89 = arith.index_cast %c8_i32 : i32 to index
    %c0_40 = arith.constant 0 : index
    %c0_41 = arith.constant 0 : index
    %90 = vector.load %arg4[%c0_39, %89, %c0_40, %c0_41] : memref<1x36x8x256xf32, #tpu.memory_space<vmem>>, vector<1x1x8x256xf32>
    %91 = vector.shape_cast %90 : vector<1x1x8x256xf32> to vector<8x256xf32>
    %c0_42 = arith.constant 0 : index
    %92 = arith.index_cast %c8_i32 : i32 to index
    %c0_43 = arith.constant 0 : index
    %93 = vector.load %arg3[%c0_42, %92, %c0_43] : memref<1x36x256xf32, #tpu.memory_space<vmem>>, vector<1x1x256xf32>
    %94 = vector.shape_cast %93 : vector<1x1x256xf32> to vector<1x256xf32>
    %95 = vector.broadcast %94 : vector<1x256xf32> to vector<8x256xf32>
    %96 = arith.mulf %91, %95 : vector<8x256xf32>
    %97 = arith.addf %86, %96 : vector<8x256xf32>
    %98 = arith.mulf %91, %91 : vector<8x256xf32>
    %99 = arith.addf %88, %98 : vector<8x256xf32>
    %c9_i32 = arith.constant 9 : i32
    %c0_44 = arith.constant 0 : index
    %100 = arith.index_cast %c9_i32 : i32 to index
    %c0_45 = arith.constant 0 : index
    %c0_46 = arith.constant 0 : index
    %101 = vector.load %arg4[%c0_44, %100, %c0_45, %c0_46] : memref<1x36x8x256xf32, #tpu.memory_space<vmem>>, vector<1x1x8x256xf32>
    %102 = vector.shape_cast %101 : vector<1x1x8x256xf32> to vector<8x256xf32>
    %c0_47 = arith.constant 0 : index
    %103 = arith.index_cast %c9_i32 : i32 to index
    %c0_48 = arith.constant 0 : index
    %104 = vector.load %arg3[%c0_47, %103, %c0_48] : memref<1x36x256xf32, #tpu.memory_space<vmem>>, vector<1x1x256xf32>
    %105 = vector.shape_cast %104 : vector<1x1x256xf32> to vector<1x256xf32>
    %106 = vector.broadcast %105 : vector<1x256xf32> to vector<8x256xf32>
    %107 = arith.mulf %102, %106 : vector<8x256xf32>
    %108 = arith.addf %97, %107 : vector<8x256xf32>
    %109 = arith.mulf %102, %102 : vector<8x256xf32>
    %110 = arith.addf %99, %109 : vector<8x256xf32>
    %c10_i32 = arith.constant 10 : i32
    %c0_49 = arith.constant 0 : index
    %111 = arith.index_cast %c10_i32 : i32 to index
    %c0_50 = arith.constant 0 : index
    %c0_51 = arith.constant 0 : index
    %112 = vector.load %arg4[%c0_49, %111, %c0_50, %c0_51] : memref<1x36x8x256xf32, #tpu.memory_space<vmem>>, vector<1x1x8x256xf32>
    %113 = vector.shape_cast %112 : vector<1x1x8x256xf32> to vector<8x256xf32>
    %c0_52 = arith.constant 0 : index
    %114 = arith.index_cast %c10_i32 : i32 to index
    %c0_53 = arith.constant 0 : index
    %115 = vector.load %arg3[%c0_52, %114, %c0_53] : memref<1x36x256xf32, #tpu.memory_space<vmem>>, vector<1x1x256xf32>
    %116 = vector.shape_cast %115 : vector<1x1x256xf32> to vector<1x256xf32>
    %117 = vector.broadcast %116 : vector<1x256xf32> to vector<8x256xf32>
    %118 = arith.mulf %113, %117 : vector<8x256xf32>
    %119 = arith.addf %108, %118 : vector<8x256xf32>
    %120 = arith.mulf %113, %113 : vector<8x256xf32>
    %121 = arith.addf %110, %120 : vector<8x256xf32>
    %c11_i32 = arith.constant 11 : i32
    %c0_54 = arith.constant 0 : index
    %122 = arith.index_cast %c11_i32 : i32 to index
    %c0_55 = arith.constant 0 : index
    %c0_56 = arith.constant 0 : index
    %123 = vector.load %arg4[%c0_54, %122, %c0_55, %c0_56] : memref<1x36x8x256xf32, #tpu.memory_space<vmem>>, vector<1x1x8x256xf32>
    %124 = vector.shape_cast %123 : vector<1x1x8x256xf32> to vector<8x256xf32>
    %c0_57 = arith.constant 0 : index
    %125 = arith.index_cast %c11_i32 : i32 to index
    %c0_58 = arith.constant 0 : index
    %126 = vector.load %arg3[%c0_57, %125, %c0_58] : memref<1x36x256xf32, #tpu.memory_space<vmem>>, vector<1x1x256xf32>
    %127 = vector.shape_cast %126 : vector<1x1x256xf32> to vector<1x256xf32>
    %128 = vector.broadcast %127 : vector<1x256xf32> to vector<8x256xf32>
    %129 = arith.mulf %124, %128 : vector<8x256xf32>
    %130 = arith.addf %119, %129 : vector<8x256xf32>
    %131 = arith.mulf %124, %124 : vector<8x256xf32>
    %132 = arith.addf %121, %131 : vector<8x256xf32>
    %c12_i32 = arith.constant 12 : i32
    %c0_59 = arith.constant 0 : index
    %133 = arith.index_cast %c12_i32 : i32 to index
    %c0_60 = arith.constant 0 : index
    %c0_61 = arith.constant 0 : index
    %134 = vector.load %arg4[%c0_59, %133, %c0_60, %c0_61] : memref<1x36x8x256xf32, #tpu.memory_space<vmem>>, vector<1x1x8x256xf32>
    %135 = vector.shape_cast %134 : vector<1x1x8x256xf32> to vector<8x256xf32>
    %c0_62 = arith.constant 0 : index
    %136 = arith.index_cast %c12_i32 : i32 to index
    %c0_63 = arith.constant 0 : index
    %137 = vector.load %arg3[%c0_62, %136, %c0_63] : memref<1x36x256xf32, #tpu.memory_space<vmem>>, vector<1x1x256xf32>
    %138 = vector.shape_cast %137 : vector<1x1x256xf32> to vector<1x256xf32>
    %139 = vector.broadcast %138 : vector<1x256xf32> to vector<8x256xf32>
    %140 = arith.mulf %135, %139 : vector<8x256xf32>
    %141 = arith.addf %130, %140 : vector<8x256xf32>
    %142 = arith.mulf %135, %135 : vector<8x256xf32>
    %143 = arith.addf %132, %142 : vector<8x256xf32>
    %c13_i32 = arith.constant 13 : i32
    %c0_64 = arith.constant 0 : index
    %144 = arith.index_cast %c13_i32 : i32 to index
    %c0_65 = arith.constant 0 : index
    %c0_66 = arith.constant 0 : index
    %145 = vector.load %arg4[%c0_64, %144, %c0_65, %c0_66] : memref<1x36x8x256xf32, #tpu.memory_space<vmem>>, vector<1x1x8x256xf32>
    %146 = vector.shape_cast %145 : vector<1x1x8x256xf32> to vector<8x256xf32>
    %c0_67 = arith.constant 0 : index
    %147 = arith.index_cast %c13_i32 : i32 to index
    %c0_68 = arith.constant 0 : index
    %148 = vector.load %arg3[%c0_67, %147, %c0_68] : memref<1x36x256xf32, #tpu.memory_space<vmem>>, vector<1x1x256xf32>
    %149 = vector.shape_cast %148 : vector<1x1x256xf32> to vector<1x256xf32>
    %150 = vector.broadcast %149 : vector<1x256xf32> to vector<8x256xf32>
    %151 = arith.mulf %146, %150 : vector<8x256xf32>
    %152 = arith.addf %141, %151 : vector<8x256xf32>
    %153 = arith.mulf %146, %146 : vector<8x256xf32>
    %154 = arith.addf %143, %153 : vector<8x256xf32>
    %c14_i32 = arith.constant 14 : i32
    %c0_69 = arith.constant 0 : index
    %155 = arith.index_cast %c14_i32 : i32 to index
    %c0_70 = arith.constant 0 : index
    %c0_71 = arith.constant 0 : index
    %156 = vector.load %arg4[%c0_69, %155, %c0_70, %c0_71] : memref<1x36x8x256xf32, #tpu.memory_space<vmem>>, vector<1x1x8x256xf32>
    %157 = vector.shape_cast %156 : vector<1x1x8x256xf32> to vector<8x256xf32>
    %c0_72 = arith.constant 0 : index
    %158 = arith.index_cast %c14_i32 : i32 to index
    %c0_73 = arith.constant 0 : index
    %159 = vector.load %arg3[%c0_72, %158, %c0_73] : memref<1x36x256xf32, #tpu.memory_space<vmem>>, vector<1x1x256xf32>
    %160 = vector.shape_cast %159 : vector<1x1x256xf32> to vector<1x256xf32>
    %161 = vector.broadcast %160 : vector<1x256xf32> to vector<8x256xf32>
    %162 = arith.mulf %157, %161 : vector<8x256xf32>
    %163 = arith.addf %152, %162 : vector<8x256xf32>
    %164 = arith.mulf %157, %157 : vector<8x256xf32>
    %165 = arith.addf %154, %164 : vector<8x256xf32>
    %c15_i32 = arith.constant 15 : i32
    %c0_74 = arith.constant 0 : index
    %166 = arith.index_cast %c15_i32 : i32 to index
    %c0_75 = arith.constant 0 : index
    %c0_76 = arith.constant 0 : index
    %167 = vector.load %arg4[%c0_74, %166, %c0_75, %c0_76] : memref<1x36x8x256xf32, #tpu.memory_space<vmem>>, vector<1x1x8x256xf32>
    %168 = vector.shape_cast %167 : vector<1x1x8x256xf32> to vector<8x256xf32>
    %c0_77 = arith.constant 0 : index
    %169 = arith.index_cast %c15_i32 : i32 to index
    %c0_78 = arith.constant 0 : index
    %170 = vector.load %arg3[%c0_77, %169, %c0_78] : memref<1x36x256xf32, #tpu.memory_space<vmem>>, vector<1x1x256xf32>
    %171 = vector.shape_cast %170 : vector<1x1x256xf32> to vector<1x256xf32>
    %172 = vector.broadcast %171 : vector<1x256xf32> to vector<8x256xf32>
    %173 = arith.mulf %168, %172 : vector<8x256xf32>
    %174 = arith.addf %163, %173 : vector<8x256xf32>
    %175 = arith.mulf %168, %168 : vector<8x256xf32>
    %176 = arith.addf %165, %175 : vector<8x256xf32>
    %c16_i32 = arith.constant 16 : i32
    %c0_79 = arith.constant 0 : index
    %177 = arith.index_cast %c16_i32 : i32 to index
    %c0_80 = arith.constant 0 : index
    %c0_81 = arith.constant 0 : index
    %178 = vector.load %arg4[%c0_79, %177, %c0_80, %c0_81] : memref<1x36x8x256xf32, #tpu.memory_space<vmem>>, vector<1x1x8x256xf32>
    %179 = vector.shape_cast %178 : vector<1x1x8x256xf32> to vector<8x256xf32>
    %c0_82 = arith.constant 0 : index
    %180 = arith.index_cast %c16_i32 : i32 to index
    %c0_83 = arith.constant 0 : index
    %181 = vector.load %arg3[%c0_82, %180, %c0_83] : memref<1x36x256xf32, #tpu.memory_space<vmem>>, vector<1x1x256xf32>
    %182 = vector.shape_cast %181 : vector<1x1x256xf32> to vector<1x256xf32>
    %183 = vector.broadcast %182 : vector<1x256xf32> to vector<8x256xf32>
    %184 = arith.mulf %179, %183 : vector<8x256xf32>
    %185 = arith.addf %174, %184 : vector<8x256xf32>
    %186 = arith.mulf %179, %179 : vector<8x256xf32>
    %187 = arith.addf %176, %186 : vector<8x256xf32>
    %c17_i32 = arith.constant 17 : i32
    %c0_84 = arith.constant 0 : index
    %188 = arith.index_cast %c17_i32 : i32 to index
    %c0_85 = arith.constant 0 : index
    %c0_86 = arith.constant 0 : index
    %189 = vector.load %arg4[%c0_84, %188, %c0_85, %c0_86] : memref<1x36x8x256xf32, #tpu.memory_space<vmem>>, vector<1x1x8x256xf32>
    %190 = vector.shape_cast %189 : vector<1x1x8x256xf32> to vector<8x256xf32>
    %c0_87 = arith.constant 0 : index
    %191 = arith.index_cast %c17_i32 : i32 to index
    %c0_88 = arith.constant 0 : index
    %192 = vector.load %arg3[%c0_87, %191, %c0_88] : memref<1x36x256xf32, #tpu.memory_space<vmem>>, vector<1x1x256xf32>
    %193 = vector.shape_cast %192 : vector<1x1x256xf32> to vector<1x256xf32>
    %194 = vector.broadcast %193 : vector<1x256xf32> to vector<8x256xf32>
    %195 = arith.mulf %190, %194 : vector<8x256xf32>
    %196 = arith.addf %185, %195 : vector<8x256xf32>
    %197 = arith.mulf %190, %190 : vector<8x256xf32>
    %198 = arith.addf %187, %197 : vector<8x256xf32>
    %c18_i32 = arith.constant 18 : i32
    %c0_89 = arith.constant 0 : index
    %199 = arith.index_cast %c18_i32 : i32 to index
    %c0_90 = arith.constant 0 : index
    %c0_91 = arith.constant 0 : index
    %200 = vector.load %arg4[%c0_89, %199, %c0_90, %c0_91] : memref<1x36x8x256xf32, #tpu.memory_space<vmem>>, vector<1x1x8x256xf32>
    %201 = vector.shape_cast %200 : vector<1x1x8x256xf32> to vector<8x256xf32>
    %c0_92 = arith.constant 0 : index
    %202 = arith.index_cast %c18_i32 : i32 to index
    %c0_93 = arith.constant 0 : index
    %203 = vector.load %arg3[%c0_92, %202, %c0_93] : memref<1x36x256xf32, #tpu.memory_space<vmem>>, vector<1x1x256xf32>
    %204 = vector.shape_cast %203 : vector<1x1x256xf32> to vector<1x256xf32>
    %205 = vector.broadcast %204 : vector<1x256xf32> to vector<8x256xf32>
    %206 = arith.mulf %201, %205 : vector<8x256xf32>
    %207 = arith.addf %196, %206 : vector<8x256xf32>
    %208 = arith.mulf %201, %201 : vector<8x256xf32>
    %209 = arith.addf %198, %208 : vector<8x256xf32>
    %c19_i32 = arith.constant 19 : i32
    %c0_94 = arith.constant 0 : index
    %210 = arith.index_cast %c19_i32 : i32 to index
    %c0_95 = arith.constant 0 : index
    %c0_96 = arith.constant 0 : index
    %211 = vector.load %arg4[%c0_94, %210, %c0_95, %c0_96] : memref<1x36x8x256xf32, #tpu.memory_space<vmem>>, vector<1x1x8x256xf32>
    %212 = vector.shape_cast %211 : vector<1x1x8x256xf32> to vector<8x256xf32>
    %c0_97 = arith.constant 0 : index
    %213 = arith.index_cast %c19_i32 : i32 to index
    %c0_98 = arith.constant 0 : index
    %214 = vector.load %arg3[%c0_97, %213, %c0_98] : memref<1x36x256xf32, #tpu.memory_space<vmem>>, vector<1x1x256xf32>
    %215 = vector.shape_cast %214 : vector<1x1x256xf32> to vector<1x256xf32>
    %216 = vector.broadcast %215 : vector<1x256xf32> to vector<8x256xf32>
    %217 = arith.mulf %212, %216 : vector<8x256xf32>
    %218 = arith.addf %207, %217 : vector<8x256xf32>
    %219 = arith.mulf %212, %212 : vector<8x256xf32>
    %220 = arith.addf %209, %219 : vector<8x256xf32>
    %c20_i32 = arith.constant 20 : i32
    %c0_99 = arith.constant 0 : index
    %221 = arith.index_cast %c20_i32 : i32 to index
    %c0_100 = arith.constant 0 : index
    %c0_101 = arith.constant 0 : index
    %222 = vector.load %arg4[%c0_99, %221, %c0_100, %c0_101] : memref<1x36x8x256xf32, #tpu.memory_space<vmem>>, vector<1x1x8x256xf32>
    %223 = vector.shape_cast %222 : vector<1x1x8x256xf32> to vector<8x256xf32>
    %c0_102 = arith.constant 0 : index
    %224 = arith.index_cast %c20_i32 : i32 to index
    %c0_103 = arith.constant 0 : index
    %225 = vector.load %arg3[%c0_102, %224, %c0_103] : memref<1x36x256xf32, #tpu.memory_space<vmem>>, vector<1x1x256xf32>
    %226 = vector.shape_cast %225 : vector<1x1x256xf32> to vector<1x256xf32>
    %227 = vector.broadcast %226 : vector<1x256xf32> to vector<8x256xf32>
    %228 = arith.mulf %223, %227 : vector<8x256xf32>
    %229 = arith.addf %218, %228 : vector<8x256xf32>
    %230 = arith.mulf %223, %223 : vector<8x256xf32>
    %231 = arith.addf %220, %230 : vector<8x256xf32>
    %c21_i32 = arith.constant 21 : i32
    %c0_104 = arith.constant 0 : index
    %232 = arith.index_cast %c21_i32 : i32 to index
    %c0_105 = arith.constant 0 : index
    %c0_106 = arith.constant 0 : index
    %233 = vector.load %arg4[%c0_104, %232, %c0_105, %c0_106] : memref<1x36x8x256xf32, #tpu.memory_space<vmem>>, vector<1x1x8x256xf32>
    %234 = vector.shape_cast %233 : vector<1x1x8x256xf32> to vector<8x256xf32>
    %c0_107 = arith.constant 0 : index
    %235 = arith.index_cast %c21_i32 : i32 to index
    %c0_108 = arith.constant 0 : index
    %236 = vector.load %arg3[%c0_107, %235, %c0_108] : memref<1x36x256xf32, #tpu.memory_space<vmem>>, vector<1x1x256xf32>
    %237 = vector.shape_cast %236 : vector<1x1x256xf32> to vector<1x256xf32>
    %238 = vector.broadcast %237 : vector<1x256xf32> to vector<8x256xf32>
    %239 = arith.mulf %234, %238 : vector<8x256xf32>
    %240 = arith.addf %229, %239 : vector<8x256xf32>
    %241 = arith.mulf %234, %234 : vector<8x256xf32>
    %242 = arith.addf %231, %241 : vector<8x256xf32>
    %c22_i32 = arith.constant 22 : i32
    %c0_109 = arith.constant 0 : index
    %243 = arith.index_cast %c22_i32 : i32 to index
    %c0_110 = arith.constant 0 : index
    %c0_111 = arith.constant 0 : index
    %244 = vector.load %arg4[%c0_109, %243, %c0_110, %c0_111] : memref<1x36x8x256xf32, #tpu.memory_space<vmem>>, vector<1x1x8x256xf32>
    %245 = vector.shape_cast %244 : vector<1x1x8x256xf32> to vector<8x256xf32>
    %c0_112 = arith.constant 0 : index
    %246 = arith.index_cast %c22_i32 : i32 to index
    %c0_113 = arith.constant 0 : index
    %247 = vector.load %arg3[%c0_112, %246, %c0_113] : memref<1x36x256xf32, #tpu.memory_space<vmem>>, vector<1x1x256xf32>
    %248 = vector.shape_cast %247 : vector<1x1x256xf32> to vector<1x256xf32>
    %249 = vector.broadcast %248 : vector<1x256xf32> to vector<8x256xf32>
    %250 = arith.mulf %245, %249 : vector<8x256xf32>
    %251 = arith.addf %240, %250 : vector<8x256xf32>
    %252 = arith.mulf %245, %245 : vector<8x256xf32>
    %253 = arith.addf %242, %252 : vector<8x256xf32>
    %c23_i32 = arith.constant 23 : i32
    %c0_114 = arith.constant 0 : index
    %254 = arith.index_cast %c23_i32 : i32 to index
    %c0_115 = arith.constant 0 : index
    %c0_116 = arith.constant 0 : index
    %255 = vector.load %arg4[%c0_114, %254, %c0_115, %c0_116] : memref<1x36x8x256xf32, #tpu.memory_space<vmem>>, vector<1x1x8x256xf32>
    %256 = vector.shape_cast %255 : vector<1x1x8x256xf32> to vector<8x256xf32>
    %c0_117 = arith.constant 0 : index
    %257 = arith.index_cast %c23_i32 : i32 to index
    %c0_118 = arith.constant 0 : index
    %258 = vector.load %arg3[%c0_117, %257, %c0_118] : memref<1x36x256xf32, #tpu.memory_space<vmem>>, vector<1x1x256xf32>
    %259 = vector.shape_cast %258 : vector<1x1x256xf32> to vector<1x256xf32>
    %260 = vector.broadcast %259 : vector<1x256xf32> to vector<8x256xf32>
    %261 = arith.mulf %256, %260 : vector<8x256xf32>
    %262 = arith.addf %251, %261 : vector<8x256xf32>
    %263 = arith.mulf %256, %256 : vector<8x256xf32>
    %264 = arith.addf %253, %263 : vector<8x256xf32>
    %c24_i32 = arith.constant 24 : i32
    %c0_119 = arith.constant 0 : index
    %265 = arith.index_cast %c24_i32 : i32 to index
    %c0_120 = arith.constant 0 : index
    %c0_121 = arith.constant 0 : index
    %266 = vector.load %arg4[%c0_119, %265, %c0_120, %c0_121] : memref<1x36x8x256xf32, #tpu.memory_space<vmem>>, vector<1x1x8x256xf32>
    %267 = vector.shape_cast %266 : vector<1x1x8x256xf32> to vector<8x256xf32>
    %c0_122 = arith.constant 0 : index
    %268 = arith.index_cast %c24_i32 : i32 to index
    %c0_123 = arith.constant 0 : index
    %269 = vector.load %arg3[%c0_122, %268, %c0_123] : memref<1x36x256xf32, #tpu.memory_space<vmem>>, vector<1x1x256xf32>
    %270 = vector.shape_cast %269 : vector<1x1x256xf32> to vector<1x256xf32>
    %271 = vector.broadcast %270 : vector<1x256xf32> to vector<8x256xf32>
    %272 = arith.mulf %267, %271 : vector<8x256xf32>
    %273 = arith.addf %262, %272 : vector<8x256xf32>
    %274 = arith.mulf %267, %267 : vector<8x256xf32>
    %275 = arith.addf %264, %274 : vector<8x256xf32>
    %c25_i32 = arith.constant 25 : i32
    %c0_124 = arith.constant 0 : index
    %276 = arith.index_cast %c25_i32 : i32 to index
    %c0_125 = arith.constant 0 : index
    %c0_126 = arith.constant 0 : index
    %277 = vector.load %arg4[%c0_124, %276, %c0_125, %c0_126] : memref<1x36x8x256xf32, #tpu.memory_space<vmem>>, vector<1x1x8x256xf32>
    %278 = vector.shape_cast %277 : vector<1x1x8x256xf32> to vector<8x256xf32>
    %c0_127 = arith.constant 0 : index
    %279 = arith.index_cast %c25_i32 : i32 to index
    %c0_128 = arith.constant 0 : index
    %280 = vector.load %arg3[%c0_127, %279, %c0_128] : memref<1x36x256xf32, #tpu.memory_space<vmem>>, vector<1x1x256xf32>
    %281 = vector.shape_cast %280 : vector<1x1x256xf32> to vector<1x256xf32>
    %282 = vector.broadcast %281 : vector<1x256xf32> to vector<8x256xf32>
    %283 = arith.mulf %278, %282 : vector<8x256xf32>
    %284 = arith.addf %273, %283 : vector<8x256xf32>
    %285 = arith.mulf %278, %278 : vector<8x256xf32>
    %286 = arith.addf %275, %285 : vector<8x256xf32>
    %c26_i32 = arith.constant 26 : i32
    %c0_129 = arith.constant 0 : index
    %287 = arith.index_cast %c26_i32 : i32 to index
    %c0_130 = arith.constant 0 : index
    %c0_131 = arith.constant 0 : index
    %288 = vector.load %arg4[%c0_129, %287, %c0_130, %c0_131] : memref<1x36x8x256xf32, #tpu.memory_space<vmem>>, vector<1x1x8x256xf32>
    %289 = vector.shape_cast %288 : vector<1x1x8x256xf32> to vector<8x256xf32>
    %c0_132 = arith.constant 0 : index
    %290 = arith.index_cast %c26_i32 : i32 to index
    %c0_133 = arith.constant 0 : index
    %291 = vector.load %arg3[%c0_132, %290, %c0_133] : memref<1x36x256xf32, #tpu.memory_space<vmem>>, vector<1x1x256xf32>
    %292 = vector.shape_cast %291 : vector<1x1x256xf32> to vector<1x256xf32>
    %293 = vector.broadcast %292 : vector<1x256xf32> to vector<8x256xf32>
    %294 = arith.mulf %289, %293 : vector<8x256xf32>
    %295 = arith.addf %284, %294 : vector<8x256xf32>
    %296 = arith.mulf %289, %289 : vector<8x256xf32>
    %297 = arith.addf %286, %296 : vector<8x256xf32>
    %c27_i32 = arith.constant 27 : i32
    %c0_134 = arith.constant 0 : index
    %298 = arith.index_cast %c27_i32 : i32 to index
    %c0_135 = arith.constant 0 : index
    %c0_136 = arith.constant 0 : index
    %299 = vector.load %arg4[%c0_134, %298, %c0_135, %c0_136] : memref<1x36x8x256xf32, #tpu.memory_space<vmem>>, vector<1x1x8x256xf32>
    %300 = vector.shape_cast %299 : vector<1x1x8x256xf32> to vector<8x256xf32>
    %c0_137 = arith.constant 0 : index
    %301 = arith.index_cast %c27_i32 : i32 to index
    %c0_138 = arith.constant 0 : index
    %302 = vector.load %arg3[%c0_137, %301, %c0_138] : memref<1x36x256xf32, #tpu.memory_space<vmem>>, vector<1x1x256xf32>
    %303 = vector.shape_cast %302 : vector<1x1x256xf32> to vector<1x256xf32>
    %304 = vector.broadcast %303 : vector<1x256xf32> to vector<8x256xf32>
    %305 = arith.mulf %300, %304 : vector<8x256xf32>
    %306 = arith.addf %295, %305 : vector<8x256xf32>
    %307 = arith.mulf %300, %300 : vector<8x256xf32>
    %308 = arith.addf %297, %307 : vector<8x256xf32>
    %c28_i32 = arith.constant 28 : i32
    %c0_139 = arith.constant 0 : index
    %309 = arith.index_cast %c28_i32 : i32 to index
    %c0_140 = arith.constant 0 : index
    %c0_141 = arith.constant 0 : index
    %310 = vector.load %arg4[%c0_139, %309, %c0_140, %c0_141] : memref<1x36x8x256xf32, #tpu.memory_space<vmem>>, vector<1x1x8x256xf32>
    %311 = vector.shape_cast %310 : vector<1x1x8x256xf32> to vector<8x256xf32>
    %c0_142 = arith.constant 0 : index
    %312 = arith.index_cast %c28_i32 : i32 to index
    %c0_143 = arith.constant 0 : index
    %313 = vector.load %arg3[%c0_142, %312, %c0_143] : memref<1x36x256xf32, #tpu.memory_space<vmem>>, vector<1x1x256xf32>
    %314 = vector.shape_cast %313 : vector<1x1x256xf32> to vector<1x256xf32>
    %315 = vector.broadcast %314 : vector<1x256xf32> to vector<8x256xf32>
    %316 = arith.mulf %311, %315 : vector<8x256xf32>
    %317 = arith.addf %306, %316 : vector<8x256xf32>
    %318 = arith.mulf %311, %311 : vector<8x256xf32>
    %319 = arith.addf %308, %318 : vector<8x256xf32>
    %c29_i32 = arith.constant 29 : i32
    %c0_144 = arith.constant 0 : index
    %320 = arith.index_cast %c29_i32 : i32 to index
    %c0_145 = arith.constant 0 : index
    %c0_146 = arith.constant 0 : index
    %321 = vector.load %arg4[%c0_144, %320, %c0_145, %c0_146] : memref<1x36x8x256xf32, #tpu.memory_space<vmem>>, vector<1x1x8x256xf32>
    %322 = vector.shape_cast %321 : vector<1x1x8x256xf32> to vector<8x256xf32>
    %c0_147 = arith.constant 0 : index
    %323 = arith.index_cast %c29_i32 : i32 to index
    %c0_148 = arith.constant 0 : index
    %324 = vector.load %arg3[%c0_147, %323, %c0_148] : memref<1x36x256xf32, #tpu.memory_space<vmem>>, vector<1x1x256xf32>
    %325 = vector.shape_cast %324 : vector<1x1x256xf32> to vector<1x256xf32>
    %326 = vector.broadcast %325 : vector<1x256xf32> to vector<8x256xf32>
    %327 = arith.mulf %322, %326 : vector<8x256xf32>
    %328 = arith.addf %317, %327 : vector<8x256xf32>
    %329 = arith.mulf %322, %322 : vector<8x256xf32>
    %330 = arith.addf %319, %329 : vector<8x256xf32>
    %c30_i32 = arith.constant 30 : i32
    %c0_149 = arith.constant 0 : index
    %331 = arith.index_cast %c30_i32 : i32 to index
    %c0_150 = arith.constant 0 : index
    %c0_151 = arith.constant 0 : index
    %332 = vector.load %arg4[%c0_149, %331, %c0_150, %c0_151] : memref<1x36x8x256xf32, #tpu.memory_space<vmem>>, vector<1x1x8x256xf32>
    %333 = vector.shape_cast %332 : vector<1x1x8x256xf32> to vector<8x256xf32>
    %c0_152 = arith.constant 0 : index
    %334 = arith.index_cast %c30_i32 : i32 to index
    %c0_153 = arith.constant 0 : index
    %335 = vector.load %arg3[%c0_152, %334, %c0_153] : memref<1x36x256xf32, #tpu.memory_space<vmem>>, vector<1x1x256xf32>
    %336 = vector.shape_cast %335 : vector<1x1x256xf32> to vector<1x256xf32>
    %337 = vector.broadcast %336 : vector<1x256xf32> to vector<8x256xf32>
    %338 = arith.mulf %333, %337 : vector<8x256xf32>
    %339 = arith.addf %328, %338 : vector<8x256xf32>
    %340 = arith.mulf %333, %333 : vector<8x256xf32>
    %341 = arith.addf %330, %340 : vector<8x256xf32>
    %c31_i32 = arith.constant 31 : i32
    %c0_154 = arith.constant 0 : index
    %342 = arith.index_cast %c31_i32 : i32 to index
    %c0_155 = arith.constant 0 : index
    %c0_156 = arith.constant 0 : index
    %343 = vector.load %arg4[%c0_154, %342, %c0_155, %c0_156] : memref<1x36x8x256xf32, #tpu.memory_space<vmem>>, vector<1x1x8x256xf32>
    %344 = vector.shape_cast %343 : vector<1x1x8x256xf32> to vector<8x256xf32>
    %c0_157 = arith.constant 0 : index
    %345 = arith.index_cast %c31_i32 : i32 to index
    %c0_158 = arith.constant 0 : index
    %346 = vector.load %arg3[%c0_157, %345, %c0_158] : memref<1x36x256xf32, #tpu.memory_space<vmem>>, vector<1x1x256xf32>
    %347 = vector.shape_cast %346 : vector<1x1x256xf32> to vector<1x256xf32>
    %348 = vector.broadcast %347 : vector<1x256xf32> to vector<8x256xf32>
    %349 = arith.mulf %344, %348 : vector<8x256xf32>
    %350 = arith.addf %339, %349 : vector<8x256xf32>
    %351 = arith.mulf %344, %344 : vector<8x256xf32>
    %352 = arith.addf %341, %351 : vector<8x256xf32>
    %c32_i32 = arith.constant 32 : i32
    %c0_159 = arith.constant 0 : index
    %353 = arith.index_cast %c32_i32 : i32 to index
    %c0_160 = arith.constant 0 : index
    %c0_161 = arith.constant 0 : index
    %354 = vector.load %arg4[%c0_159, %353, %c0_160, %c0_161] : memref<1x36x8x256xf32, #tpu.memory_space<vmem>>, vector<1x1x8x256xf32>
    %355 = vector.shape_cast %354 : vector<1x1x8x256xf32> to vector<8x256xf32>
    %c0_162 = arith.constant 0 : index
    %356 = arith.index_cast %c32_i32 : i32 to index
    %c0_163 = arith.constant 0 : index
    %357 = vector.load %arg3[%c0_162, %356, %c0_163] : memref<1x36x256xf32, #tpu.memory_space<vmem>>, vector<1x1x256xf32>
    %358 = vector.shape_cast %357 : vector<1x1x256xf32> to vector<1x256xf32>
    %359 = vector.broadcast %358 : vector<1x256xf32> to vector<8x256xf32>
    %360 = arith.mulf %355, %359 : vector<8x256xf32>
    %361 = arith.addf %350, %360 : vector<8x256xf32>
    %362 = arith.mulf %355, %355 : vector<8x256xf32>
    %363 = arith.addf %352, %362 : vector<8x256xf32>
    %c33_i32 = arith.constant 33 : i32
    %c0_164 = arith.constant 0 : index
    %364 = arith.index_cast %c33_i32 : i32 to index
    %c0_165 = arith.constant 0 : index
    %c0_166 = arith.constant 0 : index
    %365 = vector.load %arg4[%c0_164, %364, %c0_165, %c0_166] : memref<1x36x8x256xf32, #tpu.memory_space<vmem>>, vector<1x1x8x256xf32>
    %366 = vector.shape_cast %365 : vector<1x1x8x256xf32> to vector<8x256xf32>
    %c0_167 = arith.constant 0 : index
    %367 = arith.index_cast %c33_i32 : i32 to index
    %c0_168 = arith.constant 0 : index
    %368 = vector.load %arg3[%c0_167, %367, %c0_168] : memref<1x36x256xf32, #tpu.memory_space<vmem>>, vector<1x1x256xf32>
    %369 = vector.shape_cast %368 : vector<1x1x256xf32> to vector<1x256xf32>
    %370 = vector.broadcast %369 : vector<1x256xf32> to vector<8x256xf32>
    %371 = arith.mulf %366, %370 : vector<8x256xf32>
    %372 = arith.addf %361, %371 : vector<8x256xf32>
    %373 = arith.mulf %366, %366 : vector<8x256xf32>
    %374 = arith.addf %363, %373 : vector<8x256xf32>
    %c34_i32 = arith.constant 34 : i32
    %c0_169 = arith.constant 0 : index
    %375 = arith.index_cast %c34_i32 : i32 to index
    %c0_170 = arith.constant 0 : index
    %c0_171 = arith.constant 0 : index
    %376 = vector.load %arg4[%c0_169, %375, %c0_170, %c0_171] : memref<1x36x8x256xf32, #tpu.memory_space<vmem>>, vector<1x1x8x256xf32>
    %377 = vector.shape_cast %376 : vector<1x1x8x256xf32> to vector<8x256xf32>
    %c0_172 = arith.constant 0 : index
    %378 = arith.index_cast %c34_i32 : i32 to index
    %c0_173 = arith.constant 0 : index
    %379 = vector.load %arg3[%c0_172, %378, %c0_173] : memref<1x36x256xf32, #tpu.memory_space<vmem>>, vector<1x1x256xf32>
    %380 = vector.shape_cast %379 : vector<1x1x256xf32> to vector<1x256xf32>
    %381 = vector.broadcast %380 : vector<1x256xf32> to vector<8x256xf32>
    %382 = arith.mulf %377, %381 : vector<8x256xf32>
    %383 = arith.addf %372, %382 : vector<8x256xf32>
    %384 = arith.mulf %377, %377 : vector<8x256xf32>
    %385 = arith.addf %374, %384 : vector<8x256xf32>
    %c35_i32 = arith.constant 35 : i32
    %c0_174 = arith.constant 0 : index
    %386 = arith.index_cast %c35_i32 : i32 to index
    %c0_175 = arith.constant 0 : index
    %c0_176 = arith.constant 0 : index
    %387 = vector.load %arg4[%c0_174, %386, %c0_175, %c0_176] : memref<1x36x8x256xf32, #tpu.memory_space<vmem>>, vector<1x1x8x256xf32>
    %388 = vector.shape_cast %387 : vector<1x1x8x256xf32> to vector<8x256xf32>
    %c0_177 = arith.constant 0 : index
    %389 = arith.index_cast %c35_i32 : i32 to index
    %c0_178 = arith.constant 0 : index
    %390 = vector.load %arg3[%c0_177, %389, %c0_178] : memref<1x36x256xf32, #tpu.memory_space<vmem>>, vector<1x1x256xf32>
    %391 = vector.shape_cast %390 : vector<1x1x256xf32> to vector<1x256xf32>
    %392 = vector.broadcast %391 : vector<1x256xf32> to vector<8x256xf32>
    %393 = arith.mulf %388, %392 : vector<8x256xf32>
    %394 = arith.addf %383, %393 : vector<8x256xf32>
    %395 = arith.mulf %388, %388 : vector<8x256xf32>
    %396 = arith.addf %385, %395 : vector<8x256xf32>
    %c36_i32 = arith.constant 36 : i32
    %397 = math.sqrt %396 : vector<8x256xf32>
    %cst_179 = arith.constant 9.99999997E-7 : f32
    %398 = vector.broadcast %cst_179 : f32 to vector<8x256xf32>
    %399 = arith.addf %397, %398 : vector<8x256xf32>
    %400 = tpu.reciprocal %399 : vector<8x256xf32> -> vector<8x256xf32>
    %401 = arith.mulf %394, %400 : vector<8x256xf32>
    %c0_180 = arith.constant 0 : index
    %c0_181 = arith.constant 0 : index
    %c0_182 = arith.constant 0 : index
    %402 = vector.load %arg5[%c0_180, %c0_181, %c0_182] : memref<1x8x256xf32, #tpu.memory_space<vmem>>, vector<1x8x256xf32>
    %403 = vector.shape_cast %402 : vector<1x8x256xf32> to vector<8x256xf32>
    %404 = vector.shape_cast %401 : vector<8x256xf32> to vector<1x8x256xf32>
    tpu.vector_store %arg5[%c0_180, %c0_181, %c0_182], %404 {strides = array<i32>} : memref<1x8x256xf32, #tpu.memory_space<vmem>>, vector<1x8x256xf32>,
    return
  }
  func.func @transform_0(%arg0: i32, %arg1: i32, %arg2: i32) -> (i32, i32, i32) {
    %c0_i32 = arith.constant 0 : i32
    %c0_i32_0 = arith.constant 0 : i32
    return %arg0, %c0_i32, %arg1 : i32, i32, i32
  }
  func.func @transform_1(%arg0: i32, %arg1: i32, %arg2: i32) -> (i32, i32, i32, i32) {
    %c0_i32 = arith.constant 0 : i32
    %c0_i32_0 = arith.constant 0 : i32
    return %arg0, %c0_i32, %arg2, %arg1 : i32, i32, i32, i32
  }
  func.func @transform_2(%arg0: i32, %arg1: i32, %arg2: i32) -> (i32, i32, i32) {
    %c0_i32 = arith.constant 0 : i32
    return %arg0, %arg2, %arg1 : i32, i32, i32
  }
}

</mosaic_0001>

<llo_original>
// kernel: tpu_custom_call.1
$region0: #{tpu_custom_call.1}
  #allocation0 [shape = 'u32[]', space=smem, size = 0x4, offset = 0x4, fixed_abs, tag = 'smem constant byte address 0x4 - core index']
  #allocation1 [shape = 'u32[144,128]{1,0:T(1,128)}', space=vmem, size = 0x12000, scoped, tag = 'internal scratch']
  %s0 = inlined_call_operand.vmem [shape: f32[2,36,256], index: 0, kind: input, shape index: {}]
  %s1 = inlined_call_operand.hbm [shape: f32[2,36,8,256], index: 1, kind: input, shape index: {}]
  %s2 = inlined_call_operand.hbm [shape: f32[2,8,256], index: 2, kind: output, shape index: {}]
  %s3 = sld [smem:[#allocation0]]
  $region45: #{tpu_custom_call.1} parent=0
    _
  %s5 = ssub.s32 1, %s3
  %s6 = scalar_select 0, %s5, %s3
  $region1: #{tpu_custom_call.1} parent=0
    #allocation2 [shape = 'u8[589824]{0}', space=vmem, size = 0x90000, scoped, tag = 'input window, operand 1']
    #allocation3 [shape = 's32[2]{0}', space=sflag, size = 0x8, scoped, tag = 'scoped memory for tpu_custom_call.1']
    #allocation4 [shape = 's32[2]{0}', space=sflag, size = 0x8, scoped, tag = 'scoped memory for tpu_custom_call.1']
    #allocation5 [shape = 'u8[16384]{0}', space=vmem, size = 0x4000, scoped, tag = 'output window, operand 0']
    %7 = vsyncpa [#allocation3], 0
    %s8 = scalar_lea.sflag [#allocation3], 1
    %9 = vsyncpa %s8, 0
    %10 = vsyncpa [#allocation4], 0
    %s11 = scalar_lea.sflag [#allocation4], 1
    %12 = vsyncpa %s11, 0
    loop: start=0, step=1, limit=4
    $region2: #{tpu_custom_call.1} parent=1 // loop_pre_header
      _
    $region3: #{tpu_custom_call.1} parent=1 // loop_header
      %s14 = sphi 0, %s18
      %p15 = scmp.ge.s32.totalorder %s14, 4
      %s21 = sphi 0, %s40
      %s22 = sphi 0, %s36
      %s23 = sphi 0, %s32
      %s24 = sphi 0, %s21
      %s25 = sphi 0, %s22
      %s26 = sphi 0, %s23
      %s27 = sphi 0, %s24
      %s28 = sphi 0, %s25
      %s29 = sphi 0, %s26
      %s45 = sphi 0, %s47
      %s48 = sphi 0, %s45
      %s49 = sphi 0, %s48
      %s65 = sphi 0, %s49
      %s75 = sphi 0, %s77
      %s78 = sphi 0, %s75
      %s79 = sphi 0, %s78
      %s95 = sphi 0, %s79
      %s105 = sphi 0, %s107
      %s108 = sphi 0, %s105
      %s109 = sphi 0, %s108
      %s125 = sphi 0, %s109
    $region4: #{tpu_custom_call.1} parent=1 // loop_header_branch
      %17 = sbr.rel (%p15) target = $region8
    $region5: #{tpu_custom_call.1} parent=1 // loop_body
      %s19 = ssub.s32 %s14, 1
      %s20 = ssub.s32 %s14, 2
      %s30 = sadd.s32 1, %s23
      %p31 = scmp.ge.s32.totalorder %s30, 1
      %s32 = scalar_select %p31, 0, %s30
      %s33 = sadd.s32 1, %s22
      %s34 = scalar_select %p31, %s33, %s22
      %p35 = scmp.ge.s32.totalorder %s34, 1
      %s36 = scalar_select %p35, 0, %s34
      %s37 = sadd.s32 1, %s21
      %s38 = scalar_select %p35, %s37, %s21
      %p39 = scmp.ge.s32.totalorder %s38, 2
      %s40 = scalar_select %p39, 0, %s38
      %s41 = ssub.s32 %s21, %s40
      %s42 = ssub.s32 %s22, %s36
      %s43 = sor.u32 %s41, %s42
      %p44 = scmp.eq.s32.totalorder %s43, 0
      %s46 = sadd.s32 %s45, 1
      %s47 = scalar_select %p44, %s45, %s46
      %p50 = pneg %p44
      %p51 = scmp.eq.s32.totalorder %s14, 1
      %p52 = por %p50, %p51
      %p53 = scmp.ne.s32.totalorder %s45, %s48
      %p54 = scmp.eq.s32.totalorder %s14, 0
      %p55 = por %p53, %p54
      %p56 = scmp.ne.s32.totalorder %s45, %s48
      %p57 = scmp.eq.s32.totalorder %s19, 1
      %p58 = por %p56, %p57
      %p59 = scmp.ne.s32.totalorder %s48, %s49
      %p60 = scmp.eq.s32.totalorder %s19, 0
      %p61 = por %p59, %p60
      %p62 = scmp.ne.s32.totalorder %s48, %s49
      %p63 = scmp.eq.s32.totalorder %s20, 1
      %p64 = por %p62, %p63
      %p66 = scmp.ne.s32.totalorder %s49, %s65
      %p67 = scmp.eq.s32.totalorder %s20, 0
      %p68 = por %p66, %p67
      %s69 = ssub.s32 %s21, %s40
      %s70 = ssub.s32 %s23, %s32
      %s71 = sor.u32 %s69, %s70
      %s72 = ssub.s32 %s22, %s36
      %s73 = sor.u32 %s71, %s72
      %p74 = scmp.eq.s32.totalorder %s73, 0
      %s76 = sadd.s32 %s75, 1
      %s77 = scalar_select %p74, %s75, %s76
      %p80 = pneg %p74
      %p81 = scmp.eq.s32.totalorder %s14, 1
      %p82 = por %p80, %p81
      %p83 = scmp.ne.s32.totalorder %s75, %s78
      %p84 = scmp.eq.s32.totalorder %s14, 0
      %p85 = por %p83, %p84
      %p86 = scmp.ne.s32.totalorder %s75, %s78
      %p87 = scmp.eq.s32.totalorder %s19, 1
      %p88 = por %p86, %p87
      %p89 = scmp.ne.s32.totalorder %s78, %s79
      %p90 = scmp.eq.s32.totalorder %s19, 0
      %p91 = por %p89, %p90
      %p92 = scmp.ne.s32.totalorder %s78, %s79
      %p93 = scmp.eq.s32.totalorder %s20, 1
      %p94 = por %p92, %p93
      %p96 = scmp.ne.s32.totalorder %s79, %s95
      %p97 = scmp.eq.s32.totalorder %s20, 0
      %p98 = por %p96, %p97
      %s99 = ssub.s32 %s21, %s40
      %s100 = ssub.s32 %s23, %s32
      %s101 = sor.u32 %s99, %s100
      %s102 = ssub.s32 %s22, %s36
      %s103 = sor.u32 %s101, %s102
      %p104 = scmp.eq.s32.totalorder %s103, 0
      %s106 = sadd.s32 %s105, 1
      %s107 = scalar_select %p104, %s105, %s106
      %p110 = pneg %p104
      %p111 = scmp.eq.s32.totalorder %s14, 1
      %p112 = por %p110, %p111
      %p113 = scmp.ne.s32.totalorder %s105, %s108
      %p114 = scmp.eq.s32.totalorder %s14, 0
      %p115 = por %p113, %p114
      %p116 = scmp.ne.s32.totalorder %s105, %s108
      %p117 = scmp.eq.s32.totalorder %s19, 1
      %p118 = por %p116, %p117
      %p119 = scmp.ne.s32.totalorder %s108, %s109
      %p120 = scmp.eq.s32.totalorder %s19, 0
      %p121 = por %p119, %p120
      %p122 = scmp.ne.s32.totalorder %s108, %s109
      %p123 = scmp.eq.s32.totalorder %s20, 1
      %p124 = por %p122, %p123
      %p126 = scmp.ne.s32.totalorder %s109, %s125
      %p127 = scmp.eq.s32.totalorder %s20, 0
      %p128 = por %p126, %p127
      %p129 = scmp.le.s32.totalorder 1, %s14
      %p130 = scmp.lt.s32.totalorder %s14, 3
      %p131 = pnand %p129, %p130
      %p132 = pneg %p131
      // Predicated region
      $region9: #{tpu_custom_call.1} parent=5 // pred_check
        _
      $region10: #{tpu_custom_call.1} parent=5 // pred_check_branch
        %134 = sbr.rel (%p131) target = $region12
      $region11: #{tpu_custom_call.1} parent=5 // pred_region
        %s135 = ssub.s32 %s14, 1
      $region12: #{tpu_custom_call.1} parent=5 // pred_fallthru
        _
      %p136 = scmp.lt.s32.totalorder %s14, 2
      // Predicated region
      $region13: #{tpu_custom_call.1} parent=5 // pred_check
        %p137 = pneg %p136
      $region14: #{tpu_custom_call.1} parent=5 // pred_check_branch
        %139 = sbr.rel (%p137) target = $region16
      $region15: #{tpu_custom_call.1} parent=5 // pred_region
        // Predicated region
        $region17: #{tpu_custom_call.1} parent=15 // pred_check
          %p140 = pneg %p55
        $region18: #{tpu_custom_call.1} parent=15 // pred_check_branch
          %142 = sbr.rel (%p140) target = $region20
        $region19: #{tpu_custom_call.1} parent=15 // pred_region
          %s143 = smul.u32 2, %s22
          %p144 = scmp.lt.s32.totalorder %s21, 1
          %s145 = scalar_select %p144, %s21, 1
          %p146 = scmp.lt.s32.totalorder %s143, 1
          %s147 = scalar_select %p146, %s143, 1
          %s148 = smul.addr %s145, 10
          %s149 = sadd.s32 %s147, %s148
          %s150 = smul.addr %s149, 8
          %s151 = scalar_lea.vmem %s0, %s150
          %s152 = smul.u32 2, %s22
        $region20: #{tpu_custom_call.1} parent=15 // pred_fallthru
          _
        // Predicated region
        $region21: #{tpu_custom_call.1} parent=15 // pred_check
          %p153 = pneg %p85
        $region22: #{tpu_custom_call.1} parent=15 // pred_check_branch
          %155 = sbr.rel (%p153) target = $region24
        $region23: #{tpu_custom_call.1} parent=15 // pred_region
          %s156 = sand.u32 %s75, 1
          %s157 = scalar_lea.sflag [#allocation3], %s156
          %s158 = sand.u32 %s75, 1
          %s159 = smul.addr %s158, 576
          %s160 = scalar_lea.vmem [#allocation2], %s159
          %s161 = smul.u32 2, %s22
          %s163 = ssub.s32 9216, 9216
          %164 = vsyncadd %s157, %s163
          %s165 = smul.addr %s23, 2
          %s166 = sadd.s32 %s161, %s165
          %s167 = smul.addr %s21, 72
          %s168 = sadd.s32 %s166, %s167
          %s169 = smul.addr %s168, 128
          %s170 = scalar_lea.hbm %s1, %s169
          %s171 = sshll.u32 %s160, 4
          %s172 = int_to_ptr.vmem [resolvable:$true] %s171
          %177 = dma.hbm_to_vmem [thread:$0]  %s170, 9216, %s172, %s157, 256, 256, 16
        $region24: #{tpu_custom_call.1} parent=15 // pred_fallthru
          _
      $region16: #{tpu_custom_call.1} parent=5 // pred_fallthru
        _
      %p178 = scmp.le.s32.totalorder 1, %s14
      %p179 = scmp.lt.s32.totalorder %s14, 3
      %p180 = pnand %p178, %p179
      %p181 = pneg %p180
      // Predicated region
      $region25: #{tpu_custom_call.1} parent=5 // pred_check
        _
      $region26: #{tpu_custom_call.1} parent=5 // pred_check_branch
        %183 = sbr.rel (%p180) target = $region28
      $region27: #{tpu_custom_call.1} parent=5 // pred_region
        %s184 = ssub.s32 %s14, 1
        %s185 = sand.u32 %s78, 1
        %s186 = scalar_lea.sflag [#allocation3], %s185
        %s187 = sand.u32 %s78, 1
        %s188 = smul.addr %s187, 576
        %s189 = scalar_lea.vmem [#allocation2], %s188
        // Predicated region
        $region29: #{tpu_custom_call.1} parent=27 // pred_check
          %p190 = pneg %p91
        $region30: #{tpu_custom_call.1} parent=27 // pred_check_branch
          %192 = sbr.rel (%p190) target = $region32
        $region31: #{tpu_custom_call.1} parent=27 // pred_region
          %193 = dma.done %s186, 9216
        $region32: #{tpu_custom_call.1} parent=27 // pred_fallthru
          _
        %s194 = smul.u32 2, %s25
        %p195 = scmp.lt.s32.totalorder %s24, 1
        %s196 = scalar_select %p195, %s24, 1
        %p197 = scmp.lt.s32.totalorder %s194, 1
        %s198 = scalar_select %p197, %s194, 1
        %s199 = smul.addr %s196, 10
        %s200 = sadd.s32 %s198, %s199
        %s201 = smul.addr %s200, 8
        %s202 = scalar_lea.vmem %s0, %s201
        %p203 = pneg %p61
        %p204 = pneg %p58
        %s205 = sand.u32 %s78, 1
        %s206 = scalar_lea.sflag [#allocation3], %s205
        %s207 = sand.u32 %s78, 1
        %s208 = smul.addr %s207, 576
        %s209 = scalar_lea.vmem [#allocation2], %s208
        %p210 = pneg %p91
        %p211 = pneg %p88
        %p212 = pneg %p121
        %p213 = pneg %p118
        %s214 = sand.u32 %s108, 1
        %s215 = scalar_lea.sflag [#allocation4], %s214
        %s216 = sand.u32 %s108, 1
        %s217 = smul.addr %s216, 16
        %s218 = scalar_lea.vmem [#allocation5], %s217
        %s219 = smul.u32 2, %s25
        %p220 = scmp.lt.s32.totalorder %s24, 1
        %s221 = scalar_select %p220, %s24, 1
        %p222 = scmp.lt.s32.totalorder %s219, 1
        %s223 = scalar_select %p222, %s219, 1
        %s224 = smul.addr %s221, 10
        %s225 = sadd.s32 %s223, %s224
        %s226 = smul.addr %s225, 8
        %s227 = scalar_lea.vmem %s0, %s226
        %s228 = smul.u32 2, %s25
        %s229 = smul.u32 2, %s25
        %s230 = smul.u32 2, %s25
        %v231 = vld [vmem:[%s189] sm:$0xff]
        %v232 = vld [vmem:[%s189 + $0x8] sm:$0xff]
        %v233 = vld [vmem:[%s227] ss:$8 sm:$0x3]
        %v235 = vlaneseq
        %v236 = vshrl.u32 %v235, 7
        %v237 = vsub.s32 0, %v236
        %v238 = vrot.slane %v233, %v237
        %v239 = vlaneseq
        %v240 = vshrl.u32 %v239, 7
        %v241 = vsub.s32 1, %v240
        %v242 = vrot.slane %v233, %v241
        %v245 = vmul.f32 %v231, %v238
        %v246 = vmul.f32 %v232, %v242
        %v247 = vadd.f32 %v245, 0.0
        %v248 = vadd.f32 %v246, 0.0
        %v249 = vmul.f32 %v231, %v231
        %v250 = vmul.f32 %v232, %v232
        %v251 = vadd.f32 %v249, 0.0
        %v252 = vadd.f32 %v250, 0.0
        %s253 = scalar_lea.vmem %s189, 16 [#allocation2]
        %v254 = vld [vmem:[%s253] sm:$0xff]
        %v255 = vld [vmem:[%s253 + $0x8] sm:$0xff]
        %s256 = scalar_lea.vmem %s227, 1
        %v257 = vld [vmem:[%s256] ss:$8 sm:$0x3]
        %v259 = vlaneseq
        %v260 = vshrl.u32 %v259, 7
        %v261 = vsub.s32 0, %v260
        %v262 = vrot.slane %v257, %v261
        %v263 = vlaneseq
        %v264 = vshrl.u32 %v263, 7
        %v265 = vsub.s32 1, %v264
        %v266 = vrot.slane %v257, %v265
        %v269 = vmul.f32 %v254, %v262
        %v270 = vmul.f32 %v255, %v266
        %v271 = vadd.f32 %v247, %v269
        %v272 = vadd.f32 %v248, %v270
        %v273 = vmul.f32 %v254, %v254
        %v274 = vmul.f32 %v255, %v255
        %v275 = vadd.f32 %v251, %v273
        %v276 = vadd.f32 %v252, %v274
        %s277 = scalar_lea.vmem %s189, 32 [#allocation2]
        %v278 = vld [vmem:[%s277] sm:$0xff]
        %v279 = vld [vmem:[%s277 + $0x8] sm:$0xff]
        %s280 = scalar_lea.vmem %s227, 2
        %v281 = vld [vmem:[%s280] ss:$8 sm:$0x3]
        %v283 = vlaneseq
        %v284 = vshrl.u32 %v283, 7
        %v285 = vsub.s32 0, %v284
        %v286 = vrot.slane %v281, %v285
        %v287 = vlaneseq
        %v288 = vshrl.u32 %v287, 7
        %v289 = vsub.s32 1, %v288
        %v290 = vrot.slane %v281, %v289
        %v293 = vmul.f32 %v278, %v286
        %v294 = vmul.f32 %v279, %v290
        %v295 = vadd.f32 %v271, %v293
        %v296 = vadd.f32 %v272, %v294
        %v297 = vmul.f32 %v278, %v278
        %v298 = vmul.f32 %v279, %v279
        %v299 = vadd.f32 %v275, %v297
        %v300 = vadd.f32 %v276, %v298
        %s301 = scalar_lea.vmem %s189, 48 [#allocation2]
        %v302 = vld [vmem:[%s301] sm:$0xff]
        %v303 = vld [vmem:[%s301 + $0x8] sm:$0xff]
        %s304 = scalar_lea.vmem %s227, 3
        %v305 = vld [vmem:[%s304] ss:$8 sm:$0x3]
        %v307 = vlaneseq
        %v308 = vshrl.u32 %v307, 7
        %v309 = vsub.s32 0, %v308
        %v310 = vrot.slane %v305, %v309
        %v311 = vlaneseq
        %v312 = vshrl.u32 %v311, 7
        %v313 = vsub.s32 1, %v312
        %v314 = vrot.slane %v305, %v313
        %v317 = vmul.f32 %v302, %v310
        %v318 = vmul.f32 %v303, %v314
        %v319 = vadd.f32 %v295, %v317
        %v320 = vadd.f32 %v296, %v318
        %v321 = vmul.f32 %v302, %v302
        %v322 = vmul.f32 %v303, %v303
        %v323 = vadd.f32 %v299, %v321
        %v324 = vadd.f32 %v300, %v322
        %s325 = scalar_lea.vmem %s189, 64 [#allocation2]
        %v326 = vld [vmem:[%s325] sm:$0xff]
        %v327 = vld [vmem:[%s325 + $0x8] sm:$0xff]
        %s328 = scalar_lea.vmem %s227, 4
        %v329 = vld [vmem:[%s328] ss:$8 sm:$0x3]
        %v331 = vlaneseq
        %v332 = vshrl.u32 %v331, 7
        %v333 = vsub.s32 0, %v332
        %v334 = vrot.slane %v329, %v333
        %v335 = vlaneseq
        %v336 = vshrl.u32 %v335, 7
        %v337 = vsub.s32 1, %v336
        %v338 = vrot.slane %v329, %v337
        %v341 = vmul.f32 %v326, %v334
        %v342 = vmul.f32 %v327, %v338
        %v343 = vadd.f32 %v319, %v341
        %v344 = vadd.f32 %v320, %v342
        %v345 = vmul.f32 %v326, %v326
        %v346 = vmul.f32 %v327, %v327
        %v347 = vadd.f32 %v323, %v345
        %v348 = vadd.f32 %v324, %v346
        %s349 = scalar_lea.vmem %s189, 80 [#allocation2]
        %v350 = vld [vmem:[%s349] sm:$0xff]
        %v351 = vld [vmem:[%s349 + $0x8] sm:$0xff]
        %s352 = scalar_lea.vmem %s227, 5
        %v353 = vld [vmem:[%s352] ss:$8 sm:$0x3]
        %v355 = vlaneseq
        %v356 = vshrl.u32 %v355, 7
        %v357 = vsub.s32 0, %v356
        %v358 = vrot.slane %v353, %v357
        %v359 = vlaneseq
        %v360 = vshrl.u32 %v359, 7
        %v361 = vsub.s32 1, %v360
        %v362 = vrot.slane %v353, %v361
        %v365 = vmul.f32 %v350, %v358
        %v366 = vmul.f32 %v351, %v362
        %v367 = vadd.f32 %v343, %v365
        %v368 = vadd.f32 %v344, %v366
        %v369 = vmul.f32 %v350, %v350
        %v370 = vmul.f32 %v351, %v351
        %v371 = vadd.f32 %v347, %v369
        %v372 = vadd.f32 %v348, %v370
        %s373 = scalar_lea.vmem %s189, 96 [#allocation2]
        %v374 = vld [vmem:[%s373] sm:$0xff]
        %v375 = vld [vmem:[%s373 + $0x8] sm:$0xff]
        %s376 = scalar_lea.vmem %s227, 6
        %v377 = vld [vmem:[%s376] ss:$8 sm:$0x3]
        %v379 = vlaneseq
        %v380 = vshrl.u32 %v379, 7
        %v381 = vsub.s32 0, %v380
        %v382 = vrot.slane %v377, %v381
        %v383 = vlaneseq
        %v384 = vshrl.u32 %v383, 7
        %v385 = vsub.s32 1, %v384
        %v386 = vrot.slane %v377, %v385
        %v389 = vmul.f32 %v374, %v382
        %v390 = vmul.f32 %v375, %v386
        %v391 = vadd.f32 %v367, %v389
        %v392 = vadd.f32 %v368, %v390
        %v393 = vmul.f32 %v374, %v374
        %v394 = vmul.f32 %v375, %v375
        %v395 = vadd.f32 %v371, %v393
        %v396 = vadd.f32 %v372, %v394
        %s397 = scalar_lea.vmem %s189, 112 [#allocation2]
        %v398 = vld [vmem:[%s397] sm:$0xff]
        %v399 = vld [vmem:[%s397 + $0x8] sm:$0xff]
        %s400 = scalar_lea.vmem %s227, 7
        %v401 = vld [vmem:[%s400] ss:$8 sm:$0x3]
        %v403 = vlaneseq
        %v404 = vshrl.u32 %v403, 7
        %v405 = vsub.s32 0, %v404
        %v406 = vrot.slane %v401, %v405
        %v407 = vlaneseq
        %v408 = vshrl.u32 %v407, 7
        %v409 = vsub.s32 1, %v408
        %v410 = vrot.slane %v401, %v409
        %v413 = vmul.f32 %v398, %v406
        %v414 = vmul.f32 %v399, %v410
        %v415 = vadd.f32 %v391, %v413
        %v416 = vadd.f32 %v392, %v414
        %v417 = vmul.f32 %v398, %v398
        %v418 = vmul.f32 %v399, %v399
        %v419 = vadd.f32 %v395, %v417
        %v420 = vadd.f32 %v396, %v418
        %s421 = scalar_lea.vmem %s189, 128 [#allocation2]
        %v422 = vld [vmem:[%s421] sm:$0xff]
        %v423 = vld [vmem:[%s421 + $0x8] sm:$0xff]
        %s424 = scalar_lea.vmem %s227, 16
        %v425 = vld [vmem:[%s424] ss:$8 sm:$0x3]
        %v427 = vlaneseq
        %v428 = vshrl.u32 %v427, 7
        %v429 = vsub.s32 0, %v428
        %v430 = vrot.slane %v425, %v429
        %v431 = vlaneseq
        %v432 = vshrl.u32 %v431, 7
        %v433 = vsub.s32 1, %v432
        %v434 = vrot.slane %v425, %v433
        %v437 = vmul.f32 %v422, %v430
        %v438 = vmul.f32 %v423, %v434
        %v439 = vadd.f32 %v415, %v437
        %v440 = vadd.f32 %v416, %v438
        %v441 = vmul.f32 %v422, %v422
        %v442 = vmul.f32 %v423, %v423
        %v443 = vadd.f32 %v419, %v441
        %v444 = vadd.f32 %v420, %v442
        %s445 = scalar_lea.vmem %s189, 144 [#allocation2]
        %v446 = vld [vmem:[%s445] sm:$0xff]
        %v447 = vld [vmem:[%s445 + $0x8] sm:$0xff]
        %s448 = scalar_lea.vmem %s227, 17
        %v449 = vld [vmem:[%s448] ss:$8 sm:$0x3]
        %v451 = vlaneseq
        %v452 = vshrl.u32 %v451, 7
        %v453 = vsub.s32 0, %v452
        %v454 = vrot.slane %v449, %v453
        %v455 = vlaneseq
        %v456 = vshrl.u32 %v455, 7
        %v457 = vsub.s32 1, %v456
        %v458 = vrot.slane %v449, %v457
        %v461 = vmul.f32 %v446, %v454
        %v462 = vmul.f32 %v447, %v458
        %v463 = vadd.f32 %v439, %v461
        %v464 = vadd.f32 %v440, %v462
        %v465 = vmul.f32 %v446, %v446
        %v466 = vmul.f32 %v447, %v447
        %v467 = vadd.f32 %v443, %v465
        %v468 = vadd.f32 %v444, %v466
        %s469 = scalar_lea.vmem %s189, 160 [#allocation2]
        %v470 = vld [vmem:[%s469] sm:$0xff]
        %v471 = vld [vmem:[%s469 + $0x8] sm:$0xff]
        %s472 = scalar_lea.vmem %s227, 18
        %v473 = vld [vmem:[%s472] ss:$8 sm:$0x3]
        %v475 = vlaneseq
        %v476 = vshrl.u32 %v475, 7
        %v477 = vsub.s32 0, %v476
        %v478 = vrot.slane %v473, %v477
        %v479 = vlaneseq
        %v480 = vshrl.u32 %v479, 7
        %v481 = vsub.s32 1, %v480
        %v482 = vrot.slane %v473, %v481
        %v485 = vmul.f32 %v470, %v478
        %v486 = vmul.f32 %v471, %v482
        %v487 = vadd.f32 %v463, %v485
        %v488 = vadd.f32 %v464, %v486
        %v489 = vmul.f32 %v470, %v470
        %v490 = vmul.f32 %v471, %v471
        %v491 = vadd.f32 %v467, %v489
        %v492 = vadd.f32 %v468, %v490
        %s493 = scalar_lea.vmem %s189, 176 [#allocation2]
        %v494 = vld [vmem:[%s493] sm:$0xff]
        %v495 = vld [vmem:[%s493 + $0x8] sm:$0xff]
        %s496 = scalar_lea.vmem %s227, 19
        %v497 = vld [vmem:[%s496] ss:$8 sm:$0x3]
        %v499 = vlaneseq
        %v500 = vshrl.u32 %v499, 7
        %v501 = vsub.s32 0, %v500
        %v502 = vrot.slane %v497, %v501
        %v503 = vlaneseq
        %v504 = vshrl.u32 %v503, 7
        %v505 = vsub.s32 1, %v504
        %v506 = vrot.slane %v497, %v505
        %v509 = vmul.f32 %v494, %v502
        %v510 = vmul.f32 %v495, %v506
        %v511 = vadd.f32 %v487, %v509
        %v512 = vadd.f32 %v488, %v510
        %v513 = vmul.f32 %v494, %v494
        %v514 = vmul.f32 %v495, %v495
        %v515 = vadd.f32 %v491, %v513
        %v516 = vadd.f32 %v492, %v514
        %s517 = scalar_lea.vmem %s189, 192 [#allocation2]
        %v518 = vld [vmem:[%s517] sm:$0xff]
        %v519 = vld [vmem:[%s517 + $0x8] sm:$0xff]
        %s520 = scalar_lea.vmem %s227, 20
        %v521 = vld [vmem:[%s520] ss:$8 sm:$0x3]
        %v523 = vlaneseq
        %v524 = vshrl.u32 %v523, 7
        %v525 = vsub.s32 0, %v524
        %v526 = vrot.slane %v521, %v525
        %v527 = vlaneseq
        %v528 = vshrl.u32 %v527, 7
        %v529 = vsub.s32 1, %v528
        %v530 = vrot.slane %v521, %v529
        %v533 = vmul.f32 %v518, %v526
        %v534 = vmul.f32 %v519, %v530
        %v535 = vadd.f32 %v511, %v533
        %v536 = vadd.f32 %v512, %v534
        %v537 = vmul.f32 %v518, %v518
        %v538 = vmul.f32 %v519, %v519
        %v539 = vadd.f32 %v515, %v537
        %v540 = vadd.f32 %v516, %v538
        %s541 = scalar_lea.vmem %s189, 208 [#allocation2]
        %v542 = vld [vmem:[%s541] sm:$0xff]
        %v543 = vld [vmem:[%s541 + $0x8] sm:$0xff]
        %s544 = scalar_lea.vmem %s227, 21
        %v545 = vld [vmem:[%s544] ss:$8 sm:$0x3]
        %v547 = vlaneseq
        %v548 = vshrl.u32 %v547, 7
        %v549 = vsub.s32 0, %v548
        %v550 = vrot.slane %v545, %v549
        %v551 = vlaneseq
        %v552 = vshrl.u32 %v551, 7
        %v553 = vsub.s32 1, %v552
        %v554 = vrot.slane %v545, %v553
        %v557 = vmul.f32 %v542, %v550
        %v558 = vmul.f32 %v543, %v554
        %v559 = vadd.f32 %v535, %v557
        %v560 = vadd.f32 %v536, %v558
        %v561 = vmul.f32 %v542, %v542
        %v562 = vmul.f32 %v543, %v543
        %v563 = vadd.f32 %v539, %v561
        %v564 = vadd.f32 %v540, %v562
        %s565 = scalar_lea.vmem %s189, 224 [#allocation2]
        %v566 = vld [vmem:[%s565] sm:$0xff]
        %v567 = vld [vmem:[%s565 + $0x8] sm:$0xff]
        %s568 = scalar_lea.vmem %s227, 22
        %v569 = vld [vmem:[%s568] ss:$8 sm:$0x3]
        %v571 = vlaneseq
        %v572 = vshrl.u32 %v571, 7
        %v573 = vsub.s32 0, %v572
        %v574 = vrot.slane %v569, %v573
        %v575 = vlaneseq
        %v576 = vshrl.u32 %v575, 7
        %v577 = vsub.s32 1, %v576
        %v578 = vrot.slane %v569, %v577
        %v581 = vmul.f32 %v566, %v574
        %v582 = vmul.f32 %v567, %v578
        %v583 = vadd.f32 %v559, %v581
        %v584 = vadd.f32 %v560, %v582
        %v585 = vmul.f32 %v566, %v566
        %v586 = vmul.f32 %v567, %v567
        %v587 = vadd.f32 %v563, %v585
        %v588 = vadd.f32 %v564, %v586
        %s589 = scalar_lea.vmem %s189, 240 [#allocation2]
        %v590 = vld [vmem:[%s589] sm:$0xff]
        %v591 = vld [vmem:[%s589 + $0x8] sm:$0xff]
        %s592 = scalar_lea.vmem %s227, 23
        %v593 = vld [vmem:[%s592] ss:$8 sm:$0x3]
        %v595 = vlaneseq
        %v596 = vshrl.u32 %v595, 7
        %v597 = vsub.s32 0, %v596
        %v598 = vrot.slane %v593, %v597
        %v599 = vlaneseq
        %v600 = vshrl.u32 %v599, 7
        %v601 = vsub.s32 1, %v600
        %v602 = vrot.slane %v593, %v601
        %v605 = vmul.f32 %v590, %v598
        %v606 = vmul.f32 %v591, %v602
        %v607 = vadd.f32 %v583, %v605
        %v608 = vadd.f32 %v584, %v606
        %v609 = vmul.f32 %v590, %v590
        %v610 = vmul.f32 %v591, %v591
        %v611 = vadd.f32 %v587, %v609
        %v612 = vadd.f32 %v588, %v610
        %s613 = scalar_lea.vmem %s189, 256 [#allocation2]
        %v614 = vld [vmem:[%s613] sm:$0xff]
        %v615 = vld [vmem:[%s613 + $0x8] sm:$0xff]
        %s616 = scalar_lea.vmem %s227, 32
        %v617 = vld [vmem:[%s616] ss:$8 sm:$0x3]
        %v619 = vlaneseq
        %v620 = vshrl.u32 %v619, 7
        %v621 = vsub.s32 0, %v620
        %v622 = vrot.slane %v617, %v621
        %v623 = vlaneseq
        %v624 = vshrl.u32 %v623, 7
        %v625 = vsub.s32 1, %v624
        %v626 = vrot.slane %v617, %v625
        %v629 = vmul.f32 %v614, %v622
        %v630 = vmul.f32 %v615, %v626
        %v631 = vadd.f32 %v607, %v629
        %v632 = vadd.f32 %v608, %v630
        %v633 = vmul.f32 %v614, %v614
        %v634 = vmul.f32 %v615, %v615
        %v635 = vadd.f32 %v611, %v633
        %v636 = vadd.f32 %v612, %v634
        %s637 = scalar_lea.vmem %s189, 272 [#allocation2]
        %v638 = vld [vmem:[%s637] sm:$0xff]
        %v639 = vld [vmem:[%s637 + $0x8] sm:$0xff]
        %s640 = scalar_lea.vmem %s227, 33
        %v641 = vld [vmem:[%s640] ss:$8 sm:$0x3]
        %v643 = vlaneseq
        %v644 = vshrl.u32 %v643, 7
        %v645 = vsub.s32 0, %v644
        %v646 = vrot.slane %v641, %v645
        %v647 = vlaneseq
        %v648 = vshrl.u32 %v647, 7
        %v649 = vsub.s32 1, %v648
        %v650 = vrot.slane %v641, %v649
        %v653 = vmul.f32 %v638, %v646
        %v654 = vmul.f32 %v639, %v650
        %v655 = vadd.f32 %v631, %v653
        %v656 = vadd.f32 %v632, %v654
        %v657 = vmul.f32 %v638, %v638
        %v658 = vmul.f32 %v639, %v639
        %v659 = vadd.f32 %v635, %v657
        %v660 = vadd.f32 %v636, %v658
        %s661 = scalar_lea.vmem %s189, 288 [#allocation2]
        %v662 = vld [vmem:[%s661] sm:$0xff]
        %v663 = vld [vmem:[%s661 + $0x8] sm:$0xff]
        %s664 = scalar_lea.vmem %s227, 34
        %v665 = vld [vmem:[%s664] ss:$8 sm:$0x3]
        %v667 = vlaneseq
        %v668 = vshrl.u32 %v667, 7
        %v669 = vsub.s32 0, %v668
        %v670 = vrot.slane %v665, %v669
        %v671 = vlaneseq
        %v672 = vshrl.u32 %v671, 7
        %v673 = vsub.s32 1, %v672
        %v674 = vrot.slane %v665, %v673
        %v677 = vmul.f32 %v662, %v670
        %v678 = vmul.f32 %v663, %v674
        %v679 = vadd.f32 %v655, %v677
        %v680 = vadd.f32 %v656, %v678
        %v681 = vmul.f32 %v662, %v662
        %v682 = vmul.f32 %v663, %v663
        %v683 = vadd.f32 %v659, %v681
        %v684 = vadd.f32 %v660, %v682
        %s685 = scalar_lea.vmem %s189, 304 [#allocation2]
        %v686 = vld [vmem:[%s685] sm:$0xff]
        %v687 = vld [vmem:[%s685 + $0x8] sm:$0xff]
        %s688 = scalar_lea.vmem %s227, 35
        %v689 = vld [vmem:[%s688] ss:$8 sm:$0x3]
        %v691 = vlaneseq
        %v692 = vshrl.u32 %v691, 7
        %v693 = vsub.s32 0, %v692
        %v694 = vrot.slane %v689, %v693
        %v695 = vlaneseq
        %v696 = vshrl.u32 %v695, 7
        %v697 = vsub.s32 1, %v696
        %v698 = vrot.slane %v689, %v697
        %v701 = vmul.f32 %v686, %v694
        %v702 = vmul.f32 %v687, %v698
        %v703 = vadd.f32 %v679, %v701
        %v704 = vadd.f32 %v680, %v702
        %v705 = vmul.f32 %v686, %v686
        %v706 = vmul.f32 %v687, %v687
        %v707 = vadd.f32 %v683, %v705
        %v708 = vadd.f32 %v684, %v706
        %s709 = scalar_lea.vmem %s189, 320 [#allocation2]
        %v710 = vld [vmem:[%s709] sm:$0xff]
        %v711 = vld [vmem:[%s709 + $0x8] sm:$0xff]
        %s712 = scalar_lea.vmem %s227, 36
        %v713 = vld [vmem:[%s712] ss:$8 sm:$0x3]
        %v715 = vlaneseq
        %v716 = vshrl.u32 %v715, 7
        %v717 = vsub.s32 0, %v716
        %v718 = vrot.slane %v713, %v717
        %v719 = vlaneseq
        %v720 = vshrl.u32 %v719, 7
        %v721 = vsub.s32 1, %v720
        %v722 = vrot.slane %v713, %v721
        %v725 = vmul.f32 %v710, %v718
        %v726 = vmul.f32 %v711, %v722
        %v727 = vadd.f32 %v703, %v725
        %v728 = vadd.f32 %v704, %v726
        %v729 = vmul.f32 %v710, %v710
        %v730 = vmul.f32 %v711, %v711
        %v731 = vadd.f32 %v707, %v729
        %v732 = vadd.f32 %v708, %v730
        %s733 = scalar_lea.vmem %s189, 336 [#allocation2]
        %v734 = vld [vmem:[%s733] sm:$0xff]
        %v735 = vld [vmem:[%s733 + $0x8] sm:$0xff]
        %s736 = scalar_lea.vmem %s227, 37
        %v737 = vld [vmem:[%s736] ss:$8 sm:$0x3]
        %v739 = vlaneseq
        %v740 = vshrl.u32 %v739, 7
        %v741 = vsub.s32 0, %v740
        %v742 = vrot.slane %v737, %v741
        %v743 = vlaneseq
        %v744 = vshrl.u32 %v743, 7
        %v745 = vsub.s32 1, %v744
        %v746 = vrot.slane %v737, %v745
        %v749 = vmul.f32 %v734, %v742
        %v750 = vmul.f32 %v735, %v746
        %v751 = vadd.f32 %v727, %v749
        %v752 = vadd.f32 %v728, %v750
        %v753 = vmul.f32 %v734, %v734
        %v754 = vmul.f32 %v735, %v735
        %v755 = vadd.f32 %v731, %v753
        %v756 = vadd.f32 %v732, %v754
        %s757 = scalar_lea.vmem %s189, 352 [#allocation2]
        %v758 = vld [vmem:[%s757] sm:$0xff]
        %v759 = vld [vmem:[%s757 + $0x8] sm:$0xff]
        %s760 = scalar_lea.vmem %s227, 38
        %v761 = vld [vmem:[%s760] ss:$8 sm:$0x3]
        %v763 = vlaneseq
        %v764 = vshrl.u32 %v763, 7
        %v765 = vsub.s32 0, %v764
        %v766 = vrot.slane %v761, %v765
        %v767 = vlaneseq
        %v768 = vshrl.u32 %v767, 7
        %v769 = vsub.s32 1, %v768
        %v770 = vrot.slane %v761, %v769
        %v773 = vmul.f32 %v758, %v766
        %v774 = vmul.f32 %v759, %v770
        %v775 = vadd.f32 %v751, %v773
        %v776 = vadd.f32 %v752, %v774
        %v777 = vmul.f32 %v758, %v758
        %v778 = vmul.f32 %v759, %v759
        %v779 = vadd.f32 %v755, %v777
        %v780 = vadd.f32 %v756, %v778
        %s781 = scalar_lea.vmem %s189, 368 [#allocation2]
        %v782 = vld [vmem:[%s781] sm:$0xff]
        %v783 = vld [vmem:[%s781 + $0x8] sm:$0xff]
        %s784 = scalar_lea.vmem %s227, 39
        %v785 = vld [vmem:[%s784] ss:$8 sm:$0x3]
        %v787 = vlaneseq
        %v788 = vshrl.u32 %v787, 7
        %v789 = vsub.s32 0, %v788
        %v790 = vrot.slane %v785, %v789
        %v791 = vlaneseq
        %v792 = vshrl.u32 %v791, 7
        %v793 = vsub.s32 1, %v792
        %v794 = vrot.slane %v785, %v793
        %v797 = vmul.f32 %v782, %v790
        %v798 = vmul.f32 %v783, %v794
        %v799 = vadd.f32 %v775, %v797
        %v800 = vadd.f32 %v776, %v798
        %v801 = vmul.f32 %v782, %v782
        %v802 = vmul.f32 %v783, %v783
        %v803 = vadd.f32 %v779, %v801
        %v804 = vadd.f32 %v780, %v802
        %s805 = scalar_lea.vmem %s189, 384 [#allocation2]
        %v806 = vld [vmem:[%s805] sm:$0xff]
        %v807 = vld [vmem:[%s805 + $0x8] sm:$0xff]
        %s808 = scalar_lea.vmem %s227, 48
        %v809 = vld [vmem:[%s808] ss:$8 sm:$0x3]
        %v811 = vlaneseq
        %v812 = vshrl.u32 %v811, 7
        %v813 = vsub.s32 0, %v812
        %v814 = vrot.slane %v809, %v813
        %v815 = vlaneseq
        %v816 = vshrl.u32 %v815, 7
        %v817 = vsub.s32 1, %v816
        %v818 = vrot.slane %v809, %v817
        %v821 = vmul.f32 %v806, %v814
        %v822 = vmul.f32 %v807, %v818
        %v823 = vadd.f32 %v799, %v821
        %v824 = vadd.f32 %v800, %v822
        %v825 = vmul.f32 %v806, %v806
        %v826 = vmul.f32 %v807, %v807
        %v827 = vadd.f32 %v803, %v825
        %v828 = vadd.f32 %v804, %v826
        %s829 = scalar_lea.vmem %s189, 400 [#allocation2]
        %v830 = vld [vmem:[%s829] sm:$0xff]
        %v831 = vld [vmem:[%s829 + $0x8] sm:$0xff]
        %s832 = scalar_lea.vmem %s227, 49
        %v833 = vld [vmem:[%s832] ss:$8 sm:$0x3]
        %v835 = vlaneseq
        %v836 = vshrl.u32 %v835, 7
        %v837 = vsub.s32 0, %v836
        %v838 = vrot.slane %v833, %v837
        %v839 = vlaneseq
        %v840 = vshrl.u32 %v839, 7
        %v841 = vsub.s32 1, %v840
        %v842 = vrot.slane %v833, %v841
        %v845 = vmul.f32 %v830, %v838
        %v846 = vmul.f32 %v831, %v842
        %v847 = vadd.f32 %v823, %v845
        %v848 = vadd.f32 %v824, %v846
        %v849 = vmul.f32 %v830, %v830
        %v850 = vmul.f32 %v831, %v831
        %v851 = vadd.f32 %v827, %v849
        %v852 = vadd.f32 %v828, %v850
        %s853 = scalar_lea.vmem %s189, 416 [#allocation2]
        %v854 = vld [vmem:[%s853] sm:$0xff]
        %v855 = vld [vmem:[%s853 + $0x8] sm:$0xff]
        %s856 = scalar_lea.vmem %s227, 50
        %v857 = vld [vmem:[%s856] ss:$8 sm:$0x3]
        %v859 = vlaneseq
        %v860 = vshrl.u32 %v859, 7
        %v861 = vsub.s32 0, %v860
        %v862 = vrot.slane %v857, %v861
        %v863 = vlaneseq
        %v864 = vshrl.u32 %v863, 7
        %v865 = vsub.s32 1, %v864
        %v866 = vrot.slane %v857, %v865
        %v869 = vmul.f32 %v854, %v862
        %v870 = vmul.f32 %v855, %v866
        %v871 = vadd.f32 %v847, %v869
        %v872 = vadd.f32 %v848, %v870
        %v873 = vmul.f32 %v854, %v854
        %v874 = vmul.f32 %v855, %v855
        %v875 = vadd.f32 %v851, %v873
        %v876 = vadd.f32 %v852, %v874
        %s877 = scalar_lea.vmem %s189, 432 [#allocation2]
        %v878 = vld [vmem:[%s877] sm:$0xff]
        %v879 = vld [vmem:[%s877 + $0x8] sm:$0xff]
        %s880 = scalar_lea.vmem %s227, 51
        %v881 = vld [vmem:[%s880] ss:$8 sm:$0x3]
        %v883 = vlaneseq
        %v884 = vshrl.u32 %v883, 7
        %v885 = vsub.s32 0, %v884
        %v886 = vrot.slane %v881, %v885
        %v887 = vlaneseq
        %v888 = vshrl.u32 %v887, 7
        %v889 = vsub.s32 1, %v888
        %v890 = vrot.slane %v881, %v889
        %v893 = vmul.f32 %v878, %v886
        %v894 = vmul.f32 %v879, %v890
        %v895 = vadd.f32 %v871, %v893
        %v896 = vadd.f32 %v872, %v894
        %v897 = vmul.f32 %v878, %v878
        %v898 = vmul.f32 %v879, %v879
        %v899 = vadd.f32 %v875, %v897
        %v900 = vadd.f32 %v876, %v898
        %s901 = scalar_lea.vmem %s189, 448 [#allocation2]
        %v902 = vld [vmem:[%s901] sm:$0xff]
        %v903 = vld [vmem:[%s901 + $0x8] sm:$0xff]
        %s904 = scalar_lea.vmem %s227, 52
        %v905 = vld [vmem:[%s904] ss:$8 sm:$0x3]
        %v907 = vlaneseq
        %v908 = vshrl.u32 %v907, 7
        %v909 = vsub.s32 0, %v908
        %v910 = vrot.slane %v905, %v909
        %v911 = vlaneseq
        %v912 = vshrl.u32 %v911, 7
        %v913 = vsub.s32 1, %v912
        %v914 = vrot.slane %v905, %v913
        %v917 = vmul.f32 %v902, %v910
        %v918 = vmul.f32 %v903, %v914
        %v919 = vadd.f32 %v895, %v917
        %v920 = vadd.f32 %v896, %v918
        %v921 = vmul.f32 %v902, %v902
        %v922 = vmul.f32 %v903, %v903
        %v923 = vadd.f32 %v899, %v921
        %v924 = vadd.f32 %v900, %v922
        %s925 = scalar_lea.vmem %s189, 464 [#allocation2]
        %v926 = vld [vmem:[%s925] sm:$0xff]
        %v927 = vld [vmem:[%s925 + $0x8] sm:$0xff]
        %s928 = scalar_lea.vmem %s227, 53
        %v929 = vld [vmem:[%s928] ss:$8 sm:$0x3]
        %v931 = vlaneseq
        %v932 = vshrl.u32 %v931, 7
        %v933 = vsub.s32 0, %v932
        %v934 = vrot.slane %v929, %v933
        %v935 = vlaneseq
        %v936 = vshrl.u32 %v935, 7
        %v937 = vsub.s32 1, %v936
        %v938 = vrot.slane %v929, %v937
        %v941 = vmul.f32 %v926, %v934
        %v942 = vmul.f32 %v927, %v938
        %v943 = vadd.f32 %v919, %v941
        %v944 = vadd.f32 %v920, %v942
        %v945 = vmul.f32 %v926, %v926
        %v946 = vmul.f32 %v927, %v927
        %v947 = vadd.f32 %v923, %v945
        %v948 = vadd.f32 %v924, %v946
        %s949 = scalar_lea.vmem %s189, 480 [#allocation2]
        %v950 = vld [vmem:[%s949] sm:$0xff]
        %v951 = vld [vmem:[%s949 + $0x8] sm:$0xff]
        %s952 = scalar_lea.vmem %s227, 54
        %v953 = vld [vmem:[%s952] ss:$8 sm:$0x3]
        %v955 = vlaneseq
        %v956 = vshrl.u32 %v955, 7
        %v957 = vsub.s32 0, %v956
        %v958 = vrot.slane %v953, %v957
        %v959 = vlaneseq
        %v960 = vshrl.u32 %v959, 7
        %v961 = vsub.s32 1, %v960
        %v962 = vrot.slane %v953, %v961
        %v965 = vmul.f32 %v950, %v958
        %v966 = vmul.f32 %v951, %v962
        %v967 = vadd.f32 %v943, %v965
        %v968 = vadd.f32 %v944, %v966
        %v969 = vmul.f32 %v950, %v950
        %v970 = vmul.f32 %v951, %v951
        %v971 = vadd.f32 %v947, %v969
        %v972 = vadd.f32 %v948, %v970
        %s973 = scalar_lea.vmem %s189, 496 [#allocation2]
        %v974 = vld [vmem:[%s973] sm:$0xff]
        %v975 = vld [vmem:[%s973 + $0x8] sm:$0xff]
        %s976 = scalar_lea.vmem %s227, 55
        %v977 = vld [vmem:[%s976] ss:$8 sm:$0x3]
        %v979 = vlaneseq
        %v980 = vshrl.u32 %v979, 7
        %v981 = vsub.s32 0, %v980
        %v982 = vrot.slane %v977, %v981
        %v983 = vlaneseq
        %v984 = vshrl.u32 %v983, 7
        %v985 = vsub.s32 1, %v984
        %v986 = vrot.slane %v977, %v985
        %v989 = vmul.f32 %v974, %v982
        %v990 = vmul.f32 %v975, %v986
        %v991 = vadd.f32 %v967, %v989
        %v992 = vadd.f32 %v968, %v990
        %v993 = vmul.f32 %v974, %v974
        %v994 = vmul.f32 %v975, %v975
        %v995 = vadd.f32 %v971, %v993
        %v996 = vadd.f32 %v972, %v994
        %s997 = scalar_lea.vmem %s189, 512 [#allocation2]
        %v998 = vld [vmem:[%s997] sm:$0xff]
        %v999 = vld [vmem:[%s997 + $0x8] sm:$0xff]
        %s1000 = scalar_lea.vmem %s227, 64
        %v1001 = vld [vmem:[%s1000] ss:$8 sm:$0x3]
        %v1003 = vlaneseq
        %v1004 = vshrl.u32 %v1003, 7
        %v1005 = vsub.s32 0, %v1004
        %v1006 = vrot.slane %v1001, %v1005
        %v1007 = vlaneseq
        %v1008 = vshrl.u32 %v1007, 7
        %v1009 = vsub.s32 1, %v1008
        %v1010 = vrot.slane %v1001, %v1009
        %v1013 = vmul.f32 %v998, %v1006
        %v1014 = vmul.f32 %v999, %v1010
        %v1015 = vadd.f32 %v991, %v1013
        %v1016 = vadd.f32 %v992, %v1014
        %v1017 = vmul.f32 %v998, %v998
        %v1018 = vmul.f32 %v999, %v999
        %v1019 = vadd.f32 %v995, %v1017
        %v1020 = vadd.f32 %v996, %v1018
        %s1021 = scalar_lea.vmem %s189, 528 [#allocation2]
        %v1022 = vld [vmem:[%s1021] sm:$0xff]
        %v1023 = vld [vmem:[%s1021 + $0x8] sm:$0xff]
        %s1024 = scalar_lea.vmem %s227, 65
        %v1025 = vld [vmem:[%s1024] ss:$8 sm:$0x3]
        %v1027 = vlaneseq
        %v1028 = vshrl.u32 %v1027, 7
        %v1029 = vsub.s32 0, %v1028
        %v1030 = vrot.slane %v1025, %v1029
        %v1031 = vlaneseq
        %v1032 = vshrl.u32 %v1031, 7
        %v1033 = vsub.s32 1, %v1032
        %v1034 = vrot.slane %v1025, %v1033
        %v1037 = vmul.f32 %v1022, %v1030
        %v1038 = vmul.f32 %v1023, %v1034
        %v1039 = vadd.f32 %v1015, %v1037
        %v1040 = vadd.f32 %v1016, %v1038
        %v1041 = vmul.f32 %v1022, %v1022
        %v1042 = vmul.f32 %v1023, %v1023
        %v1043 = vadd.f32 %v1019, %v1041
        %v1044 = vadd.f32 %v1020, %v1042
        %s1045 = scalar_lea.vmem %s189, 544 [#allocation2]
        %v1046 = vld [vmem:[%s1045] sm:$0xff]
        %v1047 = vld [vmem:[%s1045 + $0x8] sm:$0xff]
        %s1048 = scalar_lea.vmem %s227, 66
        %v1049 = vld [vmem:[%s1048] ss:$8 sm:$0x3]
        %v1051 = vlaneseq
        %v1052 = vshrl.u32 %v1051, 7
        %v1053 = vsub.s32 0, %v1052
        %v1054 = vrot.slane %v1049, %v1053
        %v1055 = vlaneseq
        %v1056 = vshrl.u32 %v1055, 7
        %v1057 = vsub.s32 1, %v1056
        %v1058 = vrot.slane %v1049, %v1057
        %v1061 = vmul.f32 %v1046, %v1054
        %v1062 = vmul.f32 %v1047, %v1058
        %v1063 = vadd.f32 %v1039, %v1061
        %v1064 = vadd.f32 %v1040, %v1062
        %v1065 = vmul.f32 %v1046, %v1046
        %v1066 = vmul.f32 %v1047, %v1047
        %v1067 = vadd.f32 %v1043, %v1065
        %v1068 = vadd.f32 %v1044, %v1066
        %s1069 = scalar_lea.vmem %s189, 560 [#allocation2]
        %v1070 = vld [vmem:[%s1069] sm:$0xff]
        %v1071 = vld [vmem:[%s1069 + $0x8] sm:$0xff]
        %s1072 = scalar_lea.vmem %s227, 67
        %v1073 = vld [vmem:[%s1072] ss:$8 sm:$0x3]
        %v1075 = vlaneseq
        %v1076 = vshrl.u32 %v1075, 7
        %v1077 = vsub.s32 0, %v1076
        %v1078 = vrot.slane %v1073, %v1077
        %v1079 = vlaneseq
        %v1080 = vshrl.u32 %v1079, 7
        %v1081 = vsub.s32 1, %v1080
        %v1082 = vrot.slane %v1073, %v1081
        %v1085 = vmul.f32 %v1070, %v1078
        %v1086 = vmul.f32 %v1071, %v1082
        %v1087 = vadd.f32 %v1063, %v1085
        %v1088 = vadd.f32 %v1064, %v1086
        %v1089 = vmul.f32 %v1070, %v1070
        %v1090 = vmul.f32 %v1071, %v1071
        %v1091 = vadd.f32 %v1067, %v1089
        %v1092 = vadd.f32 %v1068, %v1090
        %v1093 = vrsqrt.pop %v1091
        %v1094 = vmul.f32 %v1091, %v1093
        %vm1095 = vcmp.eq.f32.partialorder %v1091, inf
        %v1096 = vsel %vm1095, %v1091, %v1094
        %vm1097 = vcmp.eq.f32.partialorder %v1091, 0.0
        %v1098 = vand.u32 %v1091, 2147483648
        %v1099 = vsel %vm1097, %v1098, %v1096
        %v1100 = vrsqrt.pop %v1092
        %v1101 = vmul.f32 %v1092, %v1100
        %vm1102 = vcmp.eq.f32.partialorder %v1092, inf
        %v1103 = vsel %vm1102, %v1092, %v1101
        %vm1104 = vcmp.eq.f32.partialorder %v1092, 0.0
        %v1105 = vand.u32 %v1092, 2147483648
        %v1106 = vsel %vm1104, %v1105, %v1103
        %v1107 = vadd.f32 %v1099, 1e-06
        %v1108 = vadd.f32 %v1106, 1e-06
        %v1109 = vrcp.pop %v1107
        %v1110 = vrcp.pop %v1108
        %v1111 = vmul.f32 %v1087, %v1109
        %v1112 = vmul.f32 %v1088, %v1110
        %1113 = vst [vmem:[%s218] sm:$0xff] %v1111
        %1114 = vst [vmem:[%s218 + $0x8] sm:$0xff] %v1112
        %s1115 = sand.u32 %s108, 1
        %s1116 = scalar_lea.sflag [#allocation4], %s1115
        %s1117 = sand.u32 %s108, 1
        %s1118 = smul.addr %s1117, 16
        %s1119 = scalar_lea.vmem [#allocation5], %s1118
        // Predicated region
        $region33: #{tpu_custom_call.1} parent=27 // pred_check
          %p1120 = pneg %p118
        $region34: #{tpu_custom_call.1} parent=27 // pred_check_branch
          %1122 = sbr.rel (%p1120) target = $region36
        $region35: #{tpu_custom_call.1} parent=27 // pred_region
          %s1123 = smul.u32 2, %s25
          %s1125 = ssub.s32 256, 256
          %1126 = vsyncadd %s1116, %s1125
          %s1127 = smul.addr %s26, 2
          %s1128 = sadd.s32 %s1123, %s1127
          %s1129 = smul.addr %s24, 2
          %s1130 = sadd.s32 %s1128, %s1129
          %s1131 = smul.addr %s1130, 128
          %s1132 = scalar_lea.hbm %s2, %s1131
          %s1134 = sshll.u32 %s1119, 4
          %s1135 = int_to_ptr.vmem [resolvable:$true] %s1134
          %1137 = dma.vmem_to_hbm [thread:$0]  %s1135, 256, %s1132, %s1116
        $region36: #{tpu_custom_call.1} parent=27 // pred_fallthru
          _
      $region28: #{tpu_custom_call.1} parent=5 // pred_fallthru
        _
      %p1138 = scmp.le.s32.totalorder 2, %s14
      // Predicated region
      $region37: #{tpu_custom_call.1} parent=5 // pred_check
        %p1139 = pneg %p1138
      $region38: #{tpu_custom_call.1} parent=5 // pred_check_branch
        %1141 = sbr.rel (%p1139) target = $region40
      $region39: #{tpu_custom_call.1} parent=5 // pred_region
        %s1142 = ssub.s32 %s14, 2
        // Predicated region
        $region41: #{tpu_custom_call.1} parent=39 // pred_check
          %p1143 = pneg %p124
        $region42: #{tpu_custom_call.1} parent=39 // pred_check_branch
          %1145 = sbr.rel (%p1143) target = $region44
        $region43: #{tpu_custom_call.1} parent=39 // pred_region
          %s1146 = sand.u32 %s109, 1
          %s1147 = scalar_lea.sflag [#allocation4], %s1146
          %s1148 = sand.u32 %s109, 1
          %s1149 = smul.addr %s1148, 16
          %s1150 = scalar_lea.vmem [#allocation5], %s1149
          %1151 = dma.done %s1147, 256
        $region44: #{tpu_custom_call.1} parent=39 // pred_fallthru
          _
      $region40: #{tpu_custom_call.1} parent=5 // pred_fallthru
        _
    $region6: #{tpu_custom_call.1} parent=1 // loop_footer
      %s18 = sadd.s32 1, %s14
    $region7: #{tpu_custom_call.1} parent=1 // loop_footer_branch
      %13 = sbr.rel target = $region3
    $region8: #{tpu_custom_call.1} parent=1 // loop_exit
      _
    %1152 = vsyncpa [#allocation3], 1
    %s1153 = scalar_lea.sflag [#allocation3], 1
    %1154 = vsyncpa %s1153, 1
    %1155 = vsyncpa [#allocation4], 1
    %s1156 = scalar_lea.sflag [#allocation4], 1
    %1157 = vsyncpa %s1156, 1

</llo_original>
